<compile_context>
chip_gen: v5e
topology: v5e:2x2
jax: 0.10.0
libtpu: 0.0.40
codegen_flags: <defaults>
</compile_context>

<pallas_src>
import math

import numpy as np
import jax
import jax.numpy as jnp
from jax.experimental import pallas as pl
from jax.experimental.pallas import tpu as pltpu

KS = 3                      # conv kernel size
NEG_SLOPE = 0.2             # LeakyReLU slope
INV_SQRT2 = 1.0 / math.sqrt(2.0)
PAD_OFF = 128               # 128-aligned interior offset inside shift scratches


def _round_up(v, m):
    return (v + m - 1) // m * m


def _tree_sum(parts):
    # pairwise reduction -> independent adds (ILP across the 4 VALU slots)
    parts = list(parts)
    while len(parts) > 1:
        nxt = [parts[i] + parts[i + 1] for i in range(0, len(parts) - 1, 2)]
        if len(parts) % 2:
            nxt.append(parts[-1])
        parts = nxt
    return parts[0]


def _tap_masks(H, W):
    """(9, H*W) float32: 1.0 where the shifted source pixel is inside the image."""
    HW = H * W
    r = np.arange(HW) // W
    c = np.arange(HW) % W
    masks = np.zeros((KS * KS, HW), np.float32)
    t = 0
    for dy in range(KS):
        for dx in range(KS):
            oy, ox = dy - 1, dx - 1
            ok = (r + oy >= 0) & (r + oy < H) & (c + ox >= 0) & (c + ox < W)
            masks[t] = ok.astype(np.float32)
            t += 1
    return jnp.asarray(masks)


def _make_resblock_kernel(H, W):
    HW = H * W
    # flat lane offsets of the 9 conv taps, row-major (dy, dx)
    shifts = [(dy - 1) * W + (dx - 1) for dy in range(KS) for dx in range(KS)]

    def kernel(x_ref, m_ref, w1_ref, b1_ref, w2_ref, b2_ref, ws_ref, bs_ref,
               out_ref, xe_ref, ye_ref):
        # x_ref  : (1, Ci, HW)  C-major input, H*W on the lane axis
        # m_ref  : (9, HW)      per-tap zero-padding masks (1.0 = in-image)
        # w1_ref : (9, Co, Ci)  conv1 weights, one (Co, Ci) matrix per tap
        # w2_ref : (9, Co, Co)  conv2 weights
        # ws_ref : (Co, Ci)     1x1 skip weights
        # b*_ref : (Co, 1)      biases (broadcast over lanes)
        # out_ref: (1, Co, HW)  lane-dense output block
        # xe_ref / ye_ref: (C, PAD_OFF + HW + 128) shift scratches; only the
        #   interior [PAD_OFF : PAD_OFF+HW) is written (128-aligned store); the
        #   uninitialised borders are always masked out via m_ref (never zeroed).
        x = x_ref[0]                                          # (Ci, HW)
        xe_ref[:, PAD_OFF:PAD_OFF + HW] = x

        def conv3x3(src_ref, w_ref, b_ref):
            parts = []
            for t, s in enumerate(shifts):
                v = src_ref[:, PAD_OFF + s:PAD_OFF + s + HW]  # shifted view
                m = m_ref[t:t + 1, :]                         # (1, HW)
                v = jnp.where(m > 0.0, v, 0.0)                # zero padding
                parts.append(jnp.dot(w_ref[t], v,             # MXU matmul
                                     preferred_element_type=jnp.float32))
            return _tree_sum(parts) + b_ref[...]

        # ConvBlock 1: 3x3 conv + bias + ReLU
        y1 = jnp.maximum(conv3x3(xe_ref, w1_ref, b1_ref), 0.0)
        ye_ref[:, PAD_OFF:PAD_OFF + HW] = y1

        # ConvBlock 2: 3x3 conv + bias, no activation
        y2 = conv3x3(ye_ref, w2_ref, b2_ref)

        # skip: 1x1 conv + bias + ReLU (ConvBlock default activ='relu')
        sk = jnp.dot(ws_ref[...], x, preferred_element_type=jnp.float32)
        sk = jnp.maximum(sk + bs_ref[...], 0.0)

        # residual add, /sqrt(2), LeakyReLU(0.2)
        o = (y2 + sk) * INV_SQRT2
        out_ref[0] = jnp.where(o >= 0.0, o, NEG_SLOPE * o).astype(out_ref.dtype)

    return kernel


@jax.jit
def resblock_forward(x_nchw, params):
    """x_nchw: (N, C_in, H, W) float32 -> (N, C_out, H, W) float32."""
    # NOTE: models the C_in != C_out configuration (skip = 1x1 ConvBlock+ReLU).
    # TODO(synk): identity skip (C_in == C_out, no up/downsample) not modeled.
    N, Cin, H, W = x_nchw.shape
    Cout = params["w1"].shape[-1]
    HW = H * W
    if W + 1 > PAD_OFF:
        # TODO(synk): spatial row-band tiling with a 1-row halo for large
        # images / v7x's smaller VMEM; this whole-image-per-step block assumes
        # a small feature map.
        raise NotImplementedError("W too large for single-block kernel")

    Ci = _round_up(Cin, 8)
    Co = _round_up(Cout, 8)

    # C-major, H*W flattened onto the lane axis (free reshape, no transpose);
    # channels zero-padded to a sublane multiple for clean MXU operands.
    x = x_nchw.astype(jnp.float32).reshape(N, Cin, HW)
    if Ci != Cin:
        x = jnp.pad(x, ((0, 0), (0, Ci - Cin), (0, 0)))

    # HWIO -> per-tap (Co, Ci) weight matrices, tap index t = ky*3 + kx.
    w1 = jnp.transpose(params["w1"], (0, 1, 3, 2)).reshape(KS * KS, Cout, Cin)
    w1 = jnp.pad(w1, ((0, 0), (0, Co - Cout), (0, Ci - Cin)))
    w2 = jnp.transpose(params["w2"], (0, 1, 3, 2)).reshape(KS * KS, Cout, Cout)
    w2 = jnp.pad(w2, ((0, 0), (0, Co - Cout), (0, Co - Cout)))
    ws = jnp.pad(params["ws"].reshape(Cin, Cout).T,
                 ((0, Co - Cout), (0, Ci - Cin)))
    b1 = jnp.pad(params["b1"], (0, Co - Cout)).reshape(Co, 1)
    b2 = jnp.pad(params["b2"], (0, Co - Cout)).reshape(Co, 1)
    bs = jnp.pad(params["bs"], (0, Co - Cout)).reshape(Co, 1)

    masks = _tap_masks(H, W)
    scr_w = PAD_OFF + HW + 128      # interior 128-aligned, >= W+1 slack each side

    out = pl.pallas_call(
        _make_resblock_kernel(H, W),
        out_shape=jax.ShapeDtypeStruct((N, Co, HW), jnp.float32),
        grid_spec=pltpu.PrefetchScalarGridSpec(
            num_scalar_prefetch=0,
            grid=(N,),
            in_specs=[
                pl.BlockSpec((1, Ci, HW), lambda n: (n, 0, 0)),
                pl.BlockSpec((KS * KS, HW), lambda n: (0, 0)),
                pl.BlockSpec((KS * KS, Co, Ci), lambda n: (0, 0, 0)),
                pl.BlockSpec((Co, 1), lambda n: (0, 0)),
                pl.BlockSpec((KS * KS, Co, Co), lambda n: (0, 0, 0)),
                pl.BlockSpec((Co, 1), lambda n: (0, 0)),
                pl.BlockSpec((Co, Ci), lambda n: (0, 0)),
                pl.BlockSpec((Co, 1), lambda n: (0, 0)),
            ],
            out_specs=pl.BlockSpec((1, Co, HW), lambda n: (n, 0, 0)),
            scratch_shapes=[
                pltpu.VMEM((Ci, scr_w), jnp.float32),   # shifted-x scratch
                pltpu.VMEM((Co, scr_w), jnp.float32),   # shifted-y1 scratch
            ],
        ),
        compiler_params=pltpu.CompilerParams(
            dimension_semantics=("parallel",),          # v7x: batch across 2 TCs
            vmem_limit_bytes=32 * 1024 * 1024,
        ),
    )(x, masks, w1, b1, w2, b2, ws, bs)

    return out[:, :Cout, :].reshape(N, Cout, H, W)


def resblock_reference(x_nchw, params):
    """Pure-JAX reference (lax.conv) for correctness checking."""
    x = jnp.transpose(x_nchw, (0, 2, 3, 1)).astype(jnp.float32)

    def conv(inp, w, b, pad):
        y = jax.lax.conv_general_dilated(
            inp, w, window_strides=(1, 1),
            padding=[(pad, pad), (pad, pad)],
            dimension_numbers=("NHWC", "HWIO", "NHWC"))
        return y + b.reshape(1, 1, 1, -1)

    y1 = jax.nn.relu(conv(x, params["w1"], params["b1"], 1))
    y2 = conv(y1, params["w2"], params["b2"], 1)
    sk = jax.nn.relu(conv(x, params["ws"], params["bs"], 0))
    o = (y2 + sk) * INV_SQRT2
    o = jnp.where(o >= 0.0, o, NEG_SLOPE * o)
    return jnp.transpose(o, (0, 3, 1, 2))


def init_params(key, c_in, c_out):
    """Deterministic synthetic init (Xavier-uniform-like), HWIO weight layout."""
    k1, k2, k3 = jax.random.split(key, 3)

    def xavier(k, shape, fan_in, fan_out):
        bound = math.sqrt(6.0 / (fan_in + fan_out))
        return jax.random.uniform(k, shape, jnp.float32, -bound, bound)

    # TODO(synk): w_norm='spectral' (power-iteration spectral_norm) not active
    # under default args, so it is not modeled here.
    w1 = xavier(k1, (KS, KS, c_in, c_out), c_in * KS * KS, c_out * KS * KS)
    w2 = xavier(k2, (KS, KS, c_out, c_out), c_out * KS * KS, c_out * KS * KS)
    ws = xavier(k3, (1, 1, c_in, c_out), c_in, c_out)
    return dict(
        w1=w1, b1=0.01 * jnp.arange(c_out, dtype=jnp.float32),
        w2=w2, b2=-0.02 * jnp.arange(c_out, dtype=jnp.float32),
        ws=ws, bs=0.03 * jnp.arange(c_out, dtype=jnp.float32),
    )


if __name__ == "__main__":
    N, C_in, C_out, H, W = 2, 4, 8, 16, 16
    key = jax.random.PRNGKey(0)
    kx, kp = jax.random.split(key)

    x = jax.random.normal(kx, (N, C_in, H, W), jnp.float32)     # NCHW input
    params = init_params(kp, C_in, C_out)

    out = jax.block_until_ready(resblock_forward(x, params))
    ref = jax.block_until_ready(resblock_reference(x, params))

    assert out.shape == (N, C_out, H, W), out.shape
    assert jnp.allclose(out, ref, rtol=1e-4, atol=1e-4), (
        float(jnp.max(jnp.abs(out - ref))))

    print("KERNEL_OK")
</pallas_src>

<mosaic_0001>
module attributes {stable_mosaic.version = 11 : i64} {
  func.func @kernel(%arg0: i32, %arg1: memref<1x8x256xf32, #tpu.memory_space<vmem>>, %arg2: memref<9x256xf32, #tpu.memory_space<vmem>>, %arg3: memref<9x8x8xf32, #tpu.memory_space<vmem>>, %arg4: memref<8x1xf32, #tpu.memory_space<vmem>>, %arg5: memref<9x8x8xf32, #tpu.memory_space<vmem>>, %arg6: memref<8x1xf32, #tpu.memory_space<vmem>>, %arg7: memref<8x8xf32, #tpu.memory_space<vmem>>, %arg8: memref<8x1xf32, #tpu.memory_space<vmem>>, %arg9: memref<1x8x256xf32, #tpu.memory_space<vmem>>, %arg10: memref<8x512xf32, #tpu.memory_space<vmem>>, %arg11: memref<8x512xf32, #tpu.memory_space<vmem>>) attributes {dimension_semantics = [#tpu.dimension_semantics<parallel>], iteration_bounds = array<i64: 2>, scalar_prefetch = 0 : i64, scratch_operands = 2 : i64, tpu.core_type = #tpu.core_type<tc>, window_params = [{transform_indices = @transform_0, window_bounds = array<i64: 1, 8, 256>}, {pipeline_mode = #tpu.pipeline_mode<synchronous>, transform_indices = @transform_1, window_bounds = array<i64: 9, 256>}, {pipeline_mode = #tpu.pipeline_mode<synchronous>, transform_indices = @transform_2, window_bounds = array<i64: 9, 8, 8>}, {pipeline_mode = #tpu.pipeline_mode<synchronous>, transform_indices = @transform_3, window_bounds = array<i64: 8, 1>}, {pipeline_mode = #tpu.pipeline_mode<synchronous>, transform_indices = @transform_4, window_bounds = array<i64: 9, 8, 8>}, {pipeline_mode = #tpu.pipeline_mode<synchronous>, transform_indices = @transform_5, window_bounds = array<i64: 8, 1>}, {pipeline_mode = #tpu.pipeline_mode<synchronous>, transform_indices = @transform_6, window_bounds = array<i64: 8, 8>}, {pipeline_mode = #tpu.pipeline_mode<synchronous>, transform_indices = @transform_7, window_bounds = array<i64: 8, 1>}, {transform_indices = @transform_8, window_bounds = array<i64: 1, 8, 256>}]} {
    %c0 = arith.constant 0 : index
    %c0_0 = arith.constant 0 : index
    %c0_1 = arith.constant 0 : index
    %0 = vector.load %arg1[%c0, %c0_0, %c0_1] : memref<1x8x256xf32, #tpu.memory_space<vmem>>, vector<1x8x256xf32>
    %1 = vector.shape_cast %0 : vector<1x8x256xf32> to vector<8x256xf32>
    %c0_2 = arith.constant 0 : index
    %c128 = arith.constant 128 : index
    %2 = vector.load %arg10[%c0_2, %c128] : memref<8x512xf32, #tpu.memory_space<vmem>>, vector<8x256xf32>
    tpu.vector_store %arg10[%c0_2, %c128], %1 {strides = array<i32>} : memref<8x512xf32, #tpu.memory_space<vmem>>, vector<8x256xf32>,
    %c0_3 = arith.constant 0 : index
    %c111 = arith.constant 111 : index
    %3 = vector.load %arg10[%c0_3, %c111] : memref<8x512xf32, #tpu.memory_space<vmem>>, vector<8x256xf32>
    %c0_4 = arith.constant 0 : index
    %c0_5 = arith.constant 0 : index
    %4 = vector.load %arg2[%c0_4, %c0_5] : memref<9x256xf32, #tpu.memory_space<vmem>>, vector<1x256xf32>
    %cst = arith.constant 0.000000e+00 : f32
    %5 = vector.broadcast %cst : f32 to vector<1x256xf32>
    %6 = arith.cmpf ogt, %4, %5 : vector<1x256xf32>
    %cst_6 = arith.constant 0.000000e+00 : f32
    %7 = vector.shape_cast %6 : vector<1x256xi1> to vector<1x256xi1>
    %8 = vector.broadcast %7 : vector<1x256xi1> to vector<8x256xi1>
    %9 = vector.broadcast %cst_6 : f32 to vector<8x256xf32>
    %10 = arith.select %8, %3, %9 : vector<8x256xi1>, vector<8x256xf32>
    %c0_7 = arith.constant 0 : index
    %c0_8 = arith.constant 0 : index
    %c0_9 = arith.constant 0 : index
    %11 = vector.load %arg3[%c0_7, %c0_8, %c0_9] : memref<9x8x8xf32, #tpu.memory_space<vmem>>, vector<1x8x8xf32>
    %12 = vector.shape_cast %11 : vector<1x8x8xf32> to vector<8x8xf32>
    %cst_10 = arith.constant dense<0.000000e+00> : vector<8x256xf32>
    %13 = tpu.matmul %12, %10, %cst_10 {dimension_numbers = #tpu.dot_dimension_numbers<[1], [0], [0], [1], [0, 0, 1, 1], [], []>} : vector<8x8xf32>, vector<8x256xf32>, vector<8x256xf32> -> vector<8x256xf32>
    %c0_11 = arith.constant 0 : index
    %c112 = arith.constant 112 : index
    %14 = vector.load %arg10[%c0_11, %c112] : memref<8x512xf32, #tpu.memory_space<vmem>>, vector<8x256xf32>
    %c1 = arith.constant 1 : index
    %c0_12 = arith.constant 0 : index
    %15 = vector.load %arg2[%c1, %c0_12] : memref<9x256xf32, #tpu.memory_space<vmem>>, vector<1x256xf32>
    %cst_13 = arith.constant 0.000000e+00 : f32
    %16 = vector.broadcast %cst_13 : f32 to vector<1x256xf32>
    %17 = arith.cmpf ogt, %15, %16 : vector<1x256xf32>
    %cst_14 = arith.constant 0.000000e+00 : f32
    %18 = vector.shape_cast %17 : vector<1x256xi1> to vector<1x256xi1>
    %19 = vector.broadcast %18 : vector<1x256xi1> to vector<8x256xi1>
    %20 = vector.broadcast %cst_14 : f32 to vector<8x256xf32>
    %21 = arith.select %19, %14, %20 : vector<8x256xi1>, vector<8x256xf32>
    %c1_15 = arith.constant 1 : index
    %c0_16 = arith.constant 0 : index
    %c0_17 = arith.constant 0 : index
    %22 = vector.load %arg3[%c1_15, %c0_16, %c0_17] : memref<9x8x8xf32, #tpu.memory_space<vmem>>, vector<1x8x8xf32>
    %23 = vector.shape_cast %22 : vector<1x8x8xf32> to vector<8x8xf32>
    %cst_18 = arith.constant dense<0.000000e+00> : vector<8x256xf32>
    %24 = tpu.matmul %23, %21, %cst_18 {dimension_numbers = #tpu.dot_dimension_numbers<[1], [0], [0], [1], [0, 0, 1, 1], [], []>} : vector<8x8xf32>, vector<8x256xf32>, vector<8x256xf32> -> vector<8x256xf32>
    %c0_19 = arith.constant 0 : index
    %c113 = arith.constant 113 : index
    %25 = vector.load %arg10[%c0_19, %c113] : memref<8x512xf32, #tpu.memory_space<vmem>>, vector<8x256xf32>
    %c2 = arith.constant 2 : index
    %c0_20 = arith.constant 0 : index
    %26 = vector.load %arg2[%c2, %c0_20] : memref<9x256xf32, #tpu.memory_space<vmem>>, vector<1x256xf32>
    %cst_21 = arith.constant 0.000000e+00 : f32
    %27 = vector.broadcast %cst_21 : f32 to vector<1x256xf32>
    %28 = arith.cmpf ogt, %26, %27 : vector<1x256xf32>
    %cst_22 = arith.constant 0.000000e+00 : f32
    %29 = vector.shape_cast %28 : vector<1x256xi1> to vector<1x256xi1>
    %30 = vector.broadcast %29 : vector<1x256xi1> to vector<8x256xi1>
    %31 = vector.broadcast %cst_22 : f32 to vector<8x256xf32>
    %32 = arith.select %30, %25, %31 : vector<8x256xi1>, vector<8x256xf32>
    %c2_23 = arith.constant 2 : index
    %c0_24 = arith.constant 0 : index
    %c0_25 = arith.constant 0 : index
    %33 = vector.load %arg3[%c2_23, %c0_24, %c0_25] : memref<9x8x8xf32, #tpu.memory_space<vmem>>, vector<1x8x8xf32>
    %34 = vector.shape_cast %33 : vector<1x8x8xf32> to vector<8x8xf32>
    %cst_26 = arith.constant dense<0.000000e+00> : vector<8x256xf32>
    %35 = tpu.matmul %34, %32, %cst_26 {dimension_numbers = #tpu.dot_dimension_numbers<[1], [0], [0], [1], [0, 0, 1, 1], [], []>} : vector<8x8xf32>, vector<8x256xf32>, vector<8x256xf32> -> vector<8x256xf32>
    %c0_27 = arith.constant 0 : index
    %c127 = arith.constant 127 : index
    %36 = vector.load %arg10[%c0_27, %c127] : memref<8x512xf32, #tpu.memory_space<vmem>>, vector<8x256xf32>
    %c3 = arith.constant 3 : index
    %c0_28 = arith.constant 0 : index
    %37 = vector.load %arg2[%c3, %c0_28] : memref<9x256xf32, #tpu.memory_space<vmem>>, vector<1x256xf32>
    %cst_29 = arith.constant 0.000000e+00 : f32
    %38 = vector.broadcast %cst_29 : f32 to vector<1x256xf32>
    %39 = arith.cmpf ogt, %37, %38 : vector<1x256xf32>
    %cst_30 = arith.constant 0.000000e+00 : f32
    %40 = vector.shape_cast %39 : vector<1x256xi1> to vector<1x256xi1>
    %41 = vector.broadcast %40 : vector<1x256xi1> to vector<8x256xi1>
    %42 = vector.broadcast %cst_30 : f32 to vector<8x256xf32>
    %43 = arith.select %41, %36, %42 : vector<8x256xi1>, vector<8x256xf32>
    %c3_31 = arith.constant 3 : index
    %c0_32 = arith.constant 0 : index
    %c0_33 = arith.constant 0 : index
    %44 = vector.load %arg3[%c3_31, %c0_32, %c0_33] : memref<9x8x8xf32, #tpu.memory_space<vmem>>, vector<1x8x8xf32>
    %45 = vector.shape_cast %44 : vector<1x8x8xf32> to vector<8x8xf32>
    %cst_34 = arith.constant dense<0.000000e+00> : vector<8x256xf32>
    %46 = tpu.matmul %45, %43, %cst_34 {dimension_numbers = #tpu.dot_dimension_numbers<[1], [0], [0], [1], [0, 0, 1, 1], [], []>} : vector<8x8xf32>, vector<8x256xf32>, vector<8x256xf32> -> vector<8x256xf32>
    %c0_35 = arith.constant 0 : index
    %c128_36 = arith.constant 128 : index
    %47 = vector.load %arg10[%c0_35, %c128_36] : memref<8x512xf32, #tpu.memory_space<vmem>>, vector<8x256xf32>
    %c4 = arith.constant 4 : index
    %c0_37 = arith.constant 0 : index
    %48 = vector.load %arg2[%c4, %c0_37] : memref<9x256xf32, #tpu.memory_space<vmem>>, vector<1x256xf32>
    %cst_38 = arith.constant 0.000000e+00 : f32
    %49 = vector.broadcast %cst_38 : f32 to vector<1x256xf32>
    %50 = arith.cmpf ogt, %48, %49 : vector<1x256xf32>
    %cst_39 = arith.constant 0.000000e+00 : f32
    %51 = vector.shape_cast %50 : vector<1x256xi1> to vector<1x256xi1>
    %52 = vector.broadcast %51 : vector<1x256xi1> to vector<8x256xi1>
    %53 = vector.broadcast %cst_39 : f32 to vector<8x256xf32>
    %54 = arith.select %52, %47, %53 : vector<8x256xi1>, vector<8x256xf32>
    %c4_40 = arith.constant 4 : index
    %c0_41 = arith.constant 0 : index
    %c0_42 = arith.constant 0 : index
    %55 = vector.load %arg3[%c4_40, %c0_41, %c0_42] : memref<9x8x8xf32, #tpu.memory_space<vmem>>, vector<1x8x8xf32>
    %56 = vector.shape_cast %55 : vector<1x8x8xf32> to vector<8x8xf32>
    %cst_43 = arith.constant dense<0.000000e+00> : vector<8x256xf32>
    %57 = tpu.matmul %56, %54, %cst_43 {dimension_numbers = #tpu.dot_dimension_numbers<[1], [0], [0], [1], [0, 0, 1, 1], [], []>} : vector<8x8xf32>, vector<8x256xf32>, vector<8x256xf32> -> vector<8x256xf32>
    %c0_44 = arith.constant 0 : index
    %c129 = arith.constant 129 : index
    %58 = vector.load %arg10[%c0_44, %c129] : memref<8x512xf32, #tpu.memory_space<vmem>>, vector<8x256xf32>
    %c5 = arith.constant 5 : index
    %c0_45 = arith.constant 0 : index
    %59 = vector.load %arg2[%c5, %c0_45] : memref<9x256xf32, #tpu.memory_space<vmem>>, vector<1x256xf32>
    %cst_46 = arith.constant 0.000000e+00 : f32
    %60 = vector.broadcast %cst_46 : f32 to vector<1x256xf32>
    %61 = arith.cmpf ogt, %59, %60 : vector<1x256xf32>
    %cst_47 = arith.constant 0.000000e+00 : f32
    %62 = vector.shape_cast %61 : vector<1x256xi1> to vector<1x256xi1>
    %63 = vector.broadcast %62 : vector<1x256xi1> to vector<8x256xi1>
    %64 = vector.broadcast %cst_47 : f32 to vector<8x256xf32>
    %65 = arith.select %63, %58, %64 : vector<8x256xi1>, vector<8x256xf32>
    %c5_48 = arith.constant 5 : index
    %c0_49 = arith.constant 0 : index
    %c0_50 = arith.constant 0 : index
    %66 = vector.load %arg3[%c5_48, %c0_49, %c0_50] : memref<9x8x8xf32, #tpu.memory_space<vmem>>, vector<1x8x8xf32>
    %67 = vector.shape_cast %66 : vector<1x8x8xf32> to vector<8x8xf32>
    %cst_51 = arith.constant dense<0.000000e+00> : vector<8x256xf32>
    %68 = tpu.matmul %67, %65, %cst_51 {dimension_numbers = #tpu.dot_dimension_numbers<[1], [0], [0], [1], [0, 0, 1, 1], [], []>} : vector<8x8xf32>, vector<8x256xf32>, vector<8x256xf32> -> vector<8x256xf32>
    %c0_52 = arith.constant 0 : index
    %c143 = arith.constant 143 : index
    %69 = vector.load %arg10[%c0_52, %c143] : memref<8x512xf32, #tpu.memory_space<vmem>>, vector<8x256xf32>
    %c6 = arith.constant 6 : index
    %c0_53 = arith.constant 0 : index
    %70 = vector.load %arg2[%c6, %c0_53] : memref<9x256xf32, #tpu.memory_space<vmem>>, vector<1x256xf32>
    %cst_54 = arith.constant 0.000000e+00 : f32
    %71 = vector.broadcast %cst_54 : f32 to vector<1x256xf32>
    %72 = arith.cmpf ogt, %70, %71 : vector<1x256xf32>
    %cst_55 = arith.constant 0.000000e+00 : f32
    %73 = vector.shape_cast %72 : vector<1x256xi1> to vector<1x256xi1>
    %74 = vector.broadcast %73 : vector<1x256xi1> to vector<8x256xi1>
    %75 = vector.broadcast %cst_55 : f32 to vector<8x256xf32>
    %76 = arith.select %74, %69, %75 : vector<8x256xi1>, vector<8x256xf32>
    %c6_56 = arith.constant 6 : index
    %c0_57 = arith.constant 0 : index
    %c0_58 = arith.constant 0 : index
    %77 = vector.load %arg3[%c6_56, %c0_57, %c0_58] : memref<9x8x8xf32, #tpu.memory_space<vmem>>, vector<1x8x8xf32>
    %78 = vector.shape_cast %77 : vector<1x8x8xf32> to vector<8x8xf32>
    %cst_59 = arith.constant dense<0.000000e+00> : vector<8x256xf32>
    %79 = tpu.matmul %78, %76, %cst_59 {dimension_numbers = #tpu.dot_dimension_numbers<[1], [0], [0], [1], [0, 0, 1, 1], [], []>} : vector<8x8xf32>, vector<8x256xf32>, vector<8x256xf32> -> vector<8x256xf32>
    %c0_60 = arith.constant 0 : index
    %c144 = arith.constant 144 : index
    %80 = vector.load %arg10[%c0_60, %c144] : memref<8x512xf32, #tpu.memory_space<vmem>>, vector<8x256xf32>
    %c7 = arith.constant 7 : index
    %c0_61 = arith.constant 0 : index
    %81 = vector.load %arg2[%c7, %c0_61] : memref<9x256xf32, #tpu.memory_space<vmem>>, vector<1x256xf32>
    %cst_62 = arith.constant 0.000000e+00 : f32
    %82 = vector.broadcast %cst_62 : f32 to vector<1x256xf32>
    %83 = arith.cmpf ogt, %81, %82 : vector<1x256xf32>
    %cst_63 = arith.constant 0.000000e+00 : f32
    %84 = vector.shape_cast %83 : vector<1x256xi1> to vector<1x256xi1>
    %85 = vector.broadcast %84 : vector<1x256xi1> to vector<8x256xi1>
    %86 = vector.broadcast %cst_63 : f32 to vector<8x256xf32>
    %87 = arith.select %85, %80, %86 : vector<8x256xi1>, vector<8x256xf32>
    %c7_64 = arith.constant 7 : index
    %c0_65 = arith.constant 0 : index
    %c0_66 = arith.constant 0 : index
    %88 = vector.load %arg3[%c7_64, %c0_65, %c0_66] : memref<9x8x8xf32, #tpu.memory_space<vmem>>, vector<1x8x8xf32>
    %89 = vector.shape_cast %88 : vector<1x8x8xf32> to vector<8x8xf32>
    %cst_67 = arith.constant dense<0.000000e+00> : vector<8x256xf32>
    %90 = tpu.matmul %89, %87, %cst_67 {dimension_numbers = #tpu.dot_dimension_numbers<[1], [0], [0], [1], [0, 0, 1, 1], [], []>} : vector<8x8xf32>, vector<8x256xf32>, vector<8x256xf32> -> vector<8x256xf32>
    %c0_68 = arith.constant 0 : index
    %c145 = arith.constant 145 : index
    %91 = vector.load %arg10[%c0_68, %c145] : memref<8x512xf32, #tpu.memory_space<vmem>>, vector<8x256xf32>
    %c8 = arith.constant 8 : index
    %c0_69 = arith.constant 0 : index
    %92 = vector.load %arg2[%c8, %c0_69] : memref<9x256xf32, #tpu.memory_space<vmem>>, vector<1x256xf32>
    %cst_70 = arith.constant 0.000000e+00 : f32
    %93 = vector.broadcast %cst_70 : f32 to vector<1x256xf32>
    %94 = arith.cmpf ogt, %92, %93 : vector<1x256xf32>
    %cst_71 = arith.constant 0.000000e+00 : f32
    %95 = vector.shape_cast %94 : vector<1x256xi1> to vector<1x256xi1>
    %96 = vector.broadcast %95 : vector<1x256xi1> to vector<8x256xi1>
    %97 = vector.broadcast %cst_71 : f32 to vector<8x256xf32>
    %98 = arith.select %96, %91, %97 : vector<8x256xi1>, vector<8x256xf32>
    %c8_72 = arith.constant 8 : index
    %c0_73 = arith.constant 0 : index
    %c0_74 = arith.constant 0 : index
    %99 = vector.load %arg3[%c8_72, %c0_73, %c0_74] : memref<9x8x8xf32, #tpu.memory_space<vmem>>, vector<1x8x8xf32>
    %100 = vector.shape_cast %99 : vector<1x8x8xf32> to vector<8x8xf32>
    %cst_75 = arith.constant dense<0.000000e+00> : vector<8x256xf32>
    %101 = tpu.matmul %100, %98, %cst_75 {dimension_numbers = #tpu.dot_dimension_numbers<[1], [0], [0], [1], [0, 0, 1, 1], [], []>} : vector<8x8xf32>, vector<8x256xf32>, vector<8x256xf32> -> vector<8x256xf32>
    %102 = arith.addf %13, %24 : vector<8x256xf32>
    %103 = arith.addf %35, %46 : vector<8x256xf32>
    %104 = arith.addf %57, %68 : vector<8x256xf32>
    %105 = arith.addf %79, %90 : vector<8x256xf32>
    %106 = arith.addf %102, %103 : vector<8x256xf32>
    %107 = arith.addf %104, %105 : vector<8x256xf32>
    %108 = arith.addf %106, %107 : vector<8x256xf32>
    %109 = arith.addf %108, %101 : vector<8x256xf32>
    %c0_76 = arith.constant 0 : index
    %c0_77 = arith.constant 0 : index
    %110 = vector.load %arg4[%c0_76, %c0_77] : memref<8x1xf32, #tpu.memory_space<vmem>>, vector<8x1xf32>
    %111 = vector.broadcast %110 : vector<8x1xf32> to vector<8x256xf32>
    %112 = arith.addf %109, %111 : vector<8x256xf32>
    %cst_78 = arith.constant 0.000000e+00 : f32
    %113 = vector.broadcast %cst_78 : f32 to vector<8x256xf32>
    %114 = arith.maximumf %112, %113 : vector<8x256xf32>
    %c0_79 = arith.constant 0 : index
    %c128_80 = arith.constant 128 : index
    %115 = vector.load %arg11[%c0_79, %c128_80] : memref<8x512xf32, #tpu.memory_space<vmem>>, vector<8x256xf32>
    tpu.vector_store %arg11[%c0_79, %c128_80], %114 {strides = array<i32>} : memref<8x512xf32, #tpu.memory_space<vmem>>, vector<8x256xf32>,
    %c0_81 = arith.constant 0 : index
    %c111_82 = arith.constant 111 : index
    %116 = vector.load %arg11[%c0_81, %c111_82] : memref<8x512xf32, #tpu.memory_space<vmem>>, vector<8x256xf32>
    %c0_83 = arith.constant 0 : index
    %c0_84 = arith.constant 0 : index
    %117 = vector.load %arg2[%c0_83, %c0_84] : memref<9x256xf32, #tpu.memory_space<vmem>>, vector<1x256xf32>
    %cst_85 = arith.constant 0.000000e+00 : f32
    %118 = vector.broadcast %cst_85 : f32 to vector<1x256xf32>
    %119 = arith.cmpf ogt, %117, %118 : vector<1x256xf32>
    %cst_86 = arith.constant 0.000000e+00 : f32
    %120 = vector.shape_cast %119 : vector<1x256xi1> to vector<1x256xi1>
    %121 = vector.broadcast %120 : vector<1x256xi1> to vector<8x256xi1>
    %122 = vector.broadcast %cst_86 : f32 to vector<8x256xf32>
    %123 = arith.select %121, %116, %122 : vector<8x256xi1>, vector<8x256xf32>
    %c0_87 = arith.constant 0 : index
    %c0_88 = arith.constant 0 : index
    %c0_89 = arith.constant 0 : index
    %124 = vector.load %arg5[%c0_87, %c0_88, %c0_89] : memref<9x8x8xf32, #tpu.memory_space<vmem>>, vector<1x8x8xf32>
    %125 = vector.shape_cast %124 : vector<1x8x8xf32> to vector<8x8xf32>
    %cst_90 = arith.constant dense<0.000000e+00> : vector<8x256xf32>
    %126 = tpu.matmul %125, %123, %cst_90 {dimension_numbers = #tpu.dot_dimension_numbers<[1], [0], [0], [1], [0, 0, 1, 1], [], []>} : vector<8x8xf32>, vector<8x256xf32>, vector<8x256xf32> -> vector<8x256xf32>
    %c0_91 = arith.constant 0 : index
    %c112_92 = arith.constant 112 : index
    %127 = vector.load %arg11[%c0_91, %c112_92] : memref<8x512xf32, #tpu.memory_space<vmem>>, vector<8x256xf32>
    %c1_93 = arith.constant 1 : index
    %c0_94 = arith.constant 0 : index
    %128 = vector.load %arg2[%c1_93, %c0_94] : memref<9x256xf32, #tpu.memory_space<vmem>>, vector<1x256xf32>
    %cst_95 = arith.constant 0.000000e+00 : f32
    %129 = vector.broadcast %cst_95 : f32 to vector<1x256xf32>
    %130 = arith.cmpf ogt, %128, %129 : vector<1x256xf32>
    %cst_96 = arith.constant 0.000000e+00 : f32
    %131 = vector.shape_cast %130 : vector<1x256xi1> to vector<1x256xi1>
    %132 = vector.broadcast %131 : vector<1x256xi1> to vector<8x256xi1>
    %133 = vector.broadcast %cst_96 : f32 to vector<8x256xf32>
    %134 = arith.select %132, %127, %133 : vector<8x256xi1>, vector<8x256xf32>
    %c1_97 = arith.constant 1 : index
    %c0_98 = arith.constant 0 : index
    %c0_99 = arith.constant 0 : index
    %135 = vector.load %arg5[%c1_97, %c0_98, %c0_99] : memref<9x8x8xf32, #tpu.memory_space<vmem>>, vector<1x8x8xf32>
    %136 = vector.shape_cast %135 : vector<1x8x8xf32> to vector<8x8xf32>
    %cst_100 = arith.constant dense<0.000000e+00> : vector<8x256xf32>
    %137 = tpu.matmul %136, %134, %cst_100 {dimension_numbers = #tpu.dot_dimension_numbers<[1], [0], [0], [1], [0, 0, 1, 1], [], []>} : vector<8x8xf32>, vector<8x256xf32>, vector<8x256xf32> -> vector<8x256xf32>
    %c0_101 = arith.constant 0 : index
    %c113_102 = arith.constant 113 : index
    %138 = vector.load %arg11[%c0_101, %c113_102] : memref<8x512xf32, #tpu.memory_space<vmem>>, vector<8x256xf32>
    %c2_103 = arith.constant 2 : index
    %c0_104 = arith.constant 0 : index
    %139 = vector.load %arg2[%c2_103, %c0_104] : memref<9x256xf32, #tpu.memory_space<vmem>>, vector<1x256xf32>
    %cst_105 = arith.constant 0.000000e+00 : f32
    %140 = vector.broadcast %cst_105 : f32 to vector<1x256xf32>
    %141 = arith.cmpf ogt, %139, %140 : vector<1x256xf32>
    %cst_106 = arith.constant 0.000000e+00 : f32
    %142 = vector.shape_cast %141 : vector<1x256xi1> to vector<1x256xi1>
    %143 = vector.broadcast %142 : vector<1x256xi1> to vector<8x256xi1>
    %144 = vector.broadcast %cst_106 : f32 to vector<8x256xf32>
    %145 = arith.select %143, %138, %144 : vector<8x256xi1>, vector<8x256xf32>
    %c2_107 = arith.constant 2 : index
    %c0_108 = arith.constant 0 : index
    %c0_109 = arith.constant 0 : index
    %146 = vector.load %arg5[%c2_107, %c0_108, %c0_109] : memref<9x8x8xf32, #tpu.memory_space<vmem>>, vector<1x8x8xf32>
    %147 = vector.shape_cast %146 : vector<1x8x8xf32> to vector<8x8xf32>
    %cst_110 = arith.constant dense<0.000000e+00> : vector<8x256xf32>
    %148 = tpu.matmul %147, %145, %cst_110 {dimension_numbers = #tpu.dot_dimension_numbers<[1], [0], [0], [1], [0, 0, 1, 1], [], []>} : vector<8x8xf32>, vector<8x256xf32>, vector<8x256xf32> -> vector<8x256xf32>
    %c0_111 = arith.constant 0 : index
    %c127_112 = arith.constant 127 : index
    %149 = vector.load %arg11[%c0_111, %c127_112] : memref<8x512xf32, #tpu.memory_space<vmem>>, vector<8x256xf32>
    %c3_113 = arith.constant 3 : index
    %c0_114 = arith.constant 0 : index
    %150 = vector.load %arg2[%c3_113, %c0_114] : memref<9x256xf32, #tpu.memory_space<vmem>>, vector<1x256xf32>
    %cst_115 = arith.constant 0.000000e+00 : f32
    %151 = vector.broadcast %cst_115 : f32 to vector<1x256xf32>
    %152 = arith.cmpf ogt, %150, %151 : vector<1x256xf32>
    %cst_116 = arith.constant 0.000000e+00 : f32
    %153 = vector.shape_cast %152 : vector<1x256xi1> to vector<1x256xi1>
    %154 = vector.broadcast %153 : vector<1x256xi1> to vector<8x256xi1>
    %155 = vector.broadcast %cst_116 : f32 to vector<8x256xf32>
    %156 = arith.select %154, %149, %155 : vector<8x256xi1>, vector<8x256xf32>
    %c3_117 = arith.constant 3 : index
    %c0_118 = arith.constant 0 : index
    %c0_119 = arith.constant 0 : index
    %157 = vector.load %arg5[%c3_117, %c0_118, %c0_119] : memref<9x8x8xf32, #tpu.memory_space<vmem>>, vector<1x8x8xf32>
    %158 = vector.shape_cast %157 : vector<1x8x8xf32> to vector<8x8xf32>
    %cst_120 = arith.constant dense<0.000000e+00> : vector<8x256xf32>
    %159 = tpu.matmul %158, %156, %cst_120 {dimension_numbers = #tpu.dot_dimension_numbers<[1], [0], [0], [1], [0, 0, 1, 1], [], []>} : vector<8x8xf32>, vector<8x256xf32>, vector<8x256xf32> -> vector<8x256xf32>
    %c0_121 = arith.constant 0 : index
    %c128_122 = arith.constant 128 : index
    %160 = vector.load %arg11[%c0_121, %c128_122] : memref<8x512xf32, #tpu.memory_space<vmem>>, vector<8x256xf32>
    %c4_123 = arith.constant 4 : index
    %c0_124 = arith.constant 0 : index
    %161 = vector.load %arg2[%c4_123, %c0_124] : memref<9x256xf32, #tpu.memory_space<vmem>>, vector<1x256xf32>
    %cst_125 = arith.constant 0.000000e+00 : f32
    %162 = vector.broadcast %cst_125 : f32 to vector<1x256xf32>
    %163 = arith.cmpf ogt, %161, %162 : vector<1x256xf32>
    %cst_126 = arith.constant 0.000000e+00 : f32
    %164 = vector.shape_cast %163 : vector<1x256xi1> to vector<1x256xi1>
    %165 = vector.broadcast %164 : vector<1x256xi1> to vector<8x256xi1>
    %166 = vector.broadcast %cst_126 : f32 to vector<8x256xf32>
    %167 = arith.select %165, %160, %166 : vector<8x256xi1>, vector<8x256xf32>
    %c4_127 = arith.constant 4 : index
    %c0_128 = arith.constant 0 : index
    %c0_129 = arith.constant 0 : index
    %168 = vector.load %arg5[%c4_127, %c0_128, %c0_129] : memref<9x8x8xf32, #tpu.memory_space<vmem>>, vector<1x8x8xf32>
    %169 = vector.shape_cast %168 : vector<1x8x8xf32> to vector<8x8xf32>
    %cst_130 = arith.constant dense<0.000000e+00> : vector<8x256xf32>
    %170 = tpu.matmul %169, %167, %cst_130 {dimension_numbers = #tpu.dot_dimension_numbers<[1], [0], [0], [1], [0, 0, 1, 1], [], []>} : vector<8x8xf32>, vector<8x256xf32>, vector<8x256xf32> -> vector<8x256xf32>
    %c0_131 = arith.constant 0 : index
    %c129_132 = arith.constant 129 : index
    %171 = vector.load %arg11[%c0_131, %c129_132] : memref<8x512xf32, #tpu.memory_space<vmem>>, vector<8x256xf32>
    %c5_133 = arith.constant 5 : index
    %c0_134 = arith.constant 0 : index
    %172 = vector.load %arg2[%c5_133, %c0_134] : memref<9x256xf32, #tpu.memory_space<vmem>>, vector<1x256xf32>
    %cst_135 = arith.constant 0.000000e+00 : f32
    %173 = vector.broadcast %cst_135 : f32 to vector<1x256xf32>
    %174 = arith.cmpf ogt, %172, %173 : vector<1x256xf32>
    %cst_136 = arith.constant 0.000000e+00 : f32
    %175 = vector.shape_cast %174 : vector<1x256xi1> to vector<1x256xi1>
    %176 = vector.broadcast %175 : vector<1x256xi1> to vector<8x256xi1>
    %177 = vector.broadcast %cst_136 : f32 to vector<8x256xf32>
    %178 = arith.select %176, %171, %177 : vector<8x256xi1>, vector<8x256xf32>
    %c5_137 = arith.constant 5 : index
    %c0_138 = arith.constant 0 : index
    %c0_139 = arith.constant 0 : index
    %179 = vector.load %arg5[%c5_137, %c0_138, %c0_139] : memref<9x8x8xf32, #tpu.memory_space<vmem>>, vector<1x8x8xf32>
    %180 = vector.shape_cast %179 : vector<1x8x8xf32> to vector<8x8xf32>
    %cst_140 = arith.constant dense<0.000000e+00> : vector<8x256xf32>
    %181 = tpu.matmul %180, %178, %cst_140 {dimension_numbers = #tpu.dot_dimension_numbers<[1], [0], [0], [1], [0, 0, 1, 1], [], []>} : vector<8x8xf32>, vector<8x256xf32>, vector<8x256xf32> -> vector<8x256xf32>
    %c0_141 = arith.constant 0 : index
    %c143_142 = arith.constant 143 : index
    %182 = vector.load %arg11[%c0_141, %c143_142] : memref<8x512xf32, #tpu.memory_space<vmem>>, vector<8x256xf32>
    %c6_143 = arith.constant 6 : index
    %c0_144 = arith.constant 0 : index
    %183 = vector.load %arg2[%c6_143, %c0_144] : memref<9x256xf32, #tpu.memory_space<vmem>>, vector<1x256xf32>
    %cst_145 = arith.constant 0.000000e+00 : f32
    %184 = vector.broadcast %cst_145 : f32 to vector<1x256xf32>
    %185 = arith.cmpf ogt, %183, %184 : vector<1x256xf32>
    %cst_146 = arith.constant 0.000000e+00 : f32
    %186 = vector.shape_cast %185 : vector<1x256xi1> to vector<1x256xi1>
    %187 = vector.broadcast %186 : vector<1x256xi1> to vector<8x256xi1>
    %188 = vector.broadcast %cst_146 : f32 to vector<8x256xf32>
    %189 = arith.select %187, %182, %188 : vector<8x256xi1>, vector<8x256xf32>
    %c6_147 = arith.constant 6 : index
    %c0_148 = arith.constant 0 : index
    %c0_149 = arith.constant 0 : index
    %190 = vector.load %arg5[%c6_147, %c0_148, %c0_149] : memref<9x8x8xf32, #tpu.memory_space<vmem>>, vector<1x8x8xf32>
    %191 = vector.shape_cast %190 : vector<1x8x8xf32> to vector<8x8xf32>
    %cst_150 = arith.constant dense<0.000000e+00> : vector<8x256xf32>
    %192 = tpu.matmul %191, %189, %cst_150 {dimension_numbers = #tpu.dot_dimension_numbers<[1], [0], [0], [1], [0, 0, 1, 1], [], []>} : vector<8x8xf32>, vector<8x256xf32>, vector<8x256xf32> -> vector<8x256xf32>
    %c0_151 = arith.constant 0 : index
    %c144_152 = arith.constant 144 : index
    %193 = vector.load %arg11[%c0_151, %c144_152] : memref<8x512xf32, #tpu.memory_space<vmem>>, vector<8x256xf32>
    %c7_153 = arith.constant 7 : index
    %c0_154 = arith.constant 0 : index
    %194 = vector.load %arg2[%c7_153, %c0_154] : memref<9x256xf32, #tpu.memory_space<vmem>>, vector<1x256xf32>
    %cst_155 = arith.constant 0.000000e+00 : f32
    %195 = vector.broadcast %cst_155 : f32 to vector<1x256xf32>
    %196 = arith.cmpf ogt, %194, %195 : vector<1x256xf32>
    %cst_156 = arith.constant 0.000000e+00 : f32
    %197 = vector.shape_cast %196 : vector<1x256xi1> to vector<1x256xi1>
    %198 = vector.broadcast %197 : vector<1x256xi1> to vector<8x256xi1>
    %199 = vector.broadcast %cst_156 : f32 to vector<8x256xf32>
    %200 = arith.select %198, %193, %199 : vector<8x256xi1>, vector<8x256xf32>
    %c7_157 = arith.constant 7 : index
    %c0_158 = arith.constant 0 : index
    %c0_159 = arith.constant 0 : index
    %201 = vector.load %arg5[%c7_157, %c0_158, %c0_159] : memref<9x8x8xf32, #tpu.memory_space<vmem>>, vector<1x8x8xf32>
    %202 = vector.shape_cast %201 : vector<1x8x8xf32> to vector<8x8xf32>
    %cst_160 = arith.constant dense<0.000000e+00> : vector<8x256xf32>
    %203 = tpu.matmul %202, %200, %cst_160 {dimension_numbers = #tpu.dot_dimension_numbers<[1], [0], [0], [1], [0, 0, 1, 1], [], []>} : vector<8x8xf32>, vector<8x256xf32>, vector<8x256xf32> -> vector<8x256xf32>
    %c0_161 = arith.constant 0 : index
    %c145_162 = arith.constant 145 : index
    %204 = vector.load %arg11[%c0_161, %c145_162] : memref<8x512xf32, #tpu.memory_space<vmem>>, vector<8x256xf32>
    %c8_163 = arith.constant 8 : index
    %c0_164 = arith.constant 0 : index
    %205 = vector.load %arg2[%c8_163, %c0_164] : memref<9x256xf32, #tpu.memory_space<vmem>>, vector<1x256xf32>
    %cst_165 = arith.constant 0.000000e+00 : f32
    %206 = vector.broadcast %cst_165 : f32 to vector<1x256xf32>
    %207 = arith.cmpf ogt, %205, %206 : vector<1x256xf32>
    %cst_166 = arith.constant 0.000000e+00 : f32
    %208 = vector.shape_cast %207 : vector<1x256xi1> to vector<1x256xi1>
    %209 = vector.broadcast %208 : vector<1x256xi1> to vector<8x256xi1>
    %210 = vector.broadcast %cst_166 : f32 to vector<8x256xf32>
    %211 = arith.select %209, %204, %210 : vector<8x256xi1>, vector<8x256xf32>
    %c8_167 = arith.constant 8 : index
    %c0_168 = arith.constant 0 : index
    %c0_169 = arith.constant 0 : index
    %212 = vector.load %arg5[%c8_167, %c0_168, %c0_169] : memref<9x8x8xf32, #tpu.memory_space<vmem>>, vector<1x8x8xf32>
    %213 = vector.shape_cast %212 : vector<1x8x8xf32> to vector<8x8xf32>
    %cst_170 = arith.constant dense<0.000000e+00> : vector<8x256xf32>
    %214 = tpu.matmul %213, %211, %cst_170 {dimension_numbers = #tpu.dot_dimension_numbers<[1], [0], [0], [1], [0, 0, 1, 1], [], []>} : vector<8x8xf32>, vector<8x256xf32>, vector<8x256xf32> -> vector<8x256xf32>
    %215 = arith.addf %126, %137 : vector<8x256xf32>
    %216 = arith.addf %148, %159 : vector<8x256xf32>
    %217 = arith.addf %170, %181 : vector<8x256xf32>
    %218 = arith.addf %192, %203 : vector<8x256xf32>
    %219 = arith.addf %215, %216 : vector<8x256xf32>
    %220 = arith.addf %217, %218 : vector<8x256xf32>
    %221 = arith.addf %219, %220 : vector<8x256xf32>
    %222 = arith.addf %221, %214 : vector<8x256xf32>
    %c0_171 = arith.constant 0 : index
    %c0_172 = arith.constant 0 : index
    %223 = vector.load %arg6[%c0_171, %c0_172] : memref<8x1xf32, #tpu.memory_space<vmem>>, vector<8x1xf32>
    %224 = vector.broadcast %223 : vector<8x1xf32> to vector<8x256xf32>
    %225 = arith.addf %222, %224 : vector<8x256xf32>
    %c0_173 = arith.constant 0 : index
    %c0_174 = arith.constant 0 : index
    %226 = vector.load %arg7[%c0_173, %c0_174] : memref<8x8xf32, #tpu.memory_space<vmem>>, vector<8x8xf32>
    %cst_175 = arith.constant dense<0.000000e+00> : vector<8x256xf32>
    %227 = tpu.matmul %226, %1, %cst_175 {dimension_numbers = #tpu.dot_dimension_numbers<[1], [0], [0], [1], [0, 0, 1, 1], [], []>} : vector<8x8xf32>, vector<8x256xf32>, vector<8x256xf32> -> vector<8x256xf32>
    %c0_176 = arith.constant 0 : index
    %c0_177 = arith.constant 0 : index
    %228 = vector.load %arg8[%c0_176, %c0_177] : memref<8x1xf32, #tpu.memory_space<vmem>>, vector<8x1xf32>
    %229 = vector.broadcast %228 : vector<8x1xf32> to vector<8x256xf32>
    %230 = arith.addf %227, %229 : vector<8x256xf32>
    %cst_178 = arith.constant 0.000000e+00 : f32
    %231 = vector.broadcast %cst_178 : f32 to vector<8x256xf32>
    %232 = arith.maximumf %230, %231 : vector<8x256xf32>
    %233 = arith.addf %225, %232 : vector<8x256xf32>
    %cst_179 = arith.constant 0.707106769 : f32
    %234 = vector.broadcast %cst_179 : f32 to vector<8x256xf32>
    %235 = arith.mulf %233, %234 : vector<8x256xf32>
    %cst_180 = arith.constant 0.000000e+00 : f32
    %236 = vector.broadcast %cst_180 : f32 to vector<8x256xf32>
    %237 = arith.cmpf oge, %235, %236 : vector<8x256xf32>
    %cst_181 = arith.constant 2.000000e-01 : f32
    %238 = vector.broadcast %cst_181 : f32 to vector<8x256xf32>
    %239 = arith.mulf %238, %235 : vector<8x256xf32>
    %240 = arith.select %237, %235, %239 : vector<8x256xi1>, vector<8x256xf32>
    %c0_182 = arith.constant 0 : index
    %c0_183 = arith.constant 0 : index
    %c0_184 = arith.constant 0 : index
    %241 = vector.load %arg9[%c0_182, %c0_183, %c0_184] : memref<1x8x256xf32, #tpu.memory_space<vmem>>, vector<1x8x256xf32>
    %242 = vector.shape_cast %241 : vector<1x8x256xf32> to vector<8x256xf32>
    %243 = vector.shape_cast %240 : vector<8x256xf32> to vector<1x8x256xf32>
    tpu.vector_store %arg9[%c0_182, %c0_183, %c0_184], %243 {strides = array<i32>} : memref<1x8x256xf32, #tpu.memory_space<vmem>>, vector<1x8x256xf32>,
    return
  }
  func.func @transform_0(%arg0: i32) -> (i32, i32, i32) {
    %c0_i32 = arith.constant 0 : i32
    %c0_i32_0 = arith.constant 0 : i32
    %c0_i32_1 = arith.constant 0 : i32
    return %arg0, %c0_i32, %c0_i32_0 : i32, i32, i32
  }
  func.func @transform_1(%arg0: i32) -> (i32, i32) {
    %c0_i32 = arith.constant 0 : i32
    %c0_i32_0 = arith.constant 0 : i32
    %c0_i32_1 = arith.constant 0 : i32
    return %c0_i32, %c0_i32_0 : i32, i32
  }
  func.func @transform_2(%arg0: i32) -> (i32, i32, i32) {
    %c0_i32 = arith.constant 0 : i32
    %c0_i32_0 = arith.constant 0 : i32
    %c0_i32_1 = arith.constant 0 : i32
    %c0_i32_2 = arith.constant 0 : i32
    return %c0_i32, %c0_i32_0, %c0_i32_1 : i32, i32, i32
  }
  func.func @transform_3(%arg0: i32) -> (i32, i32) {
    %c0_i32 = arith.constant 0 : i32
    %c0_i32_0 = arith.constant 0 : i32
    %c0_i32_1 = arith.constant 0 : i32
    return %c0_i32, %c0_i32_0 : i32, i32
  }
  func.func @transform_4(%arg0: i32) -> (i32, i32, i32) {
    %c0_i32 = arith.constant 0 : i32
    %c0_i32_0 = arith.constant 0 : i32
    %c0_i32_1 = arith.constant 0 : i32
    %c0_i32_2 = arith.constant 0 : i32
    return %c0_i32, %c0_i32_0, %c0_i32_1 : i32, i32, i32
  }
  func.func @transform_5(%arg0: i32) -> (i32, i32) {
    %c0_i32 = arith.constant 0 : i32
    %c0_i32_0 = arith.constant 0 : i32
    %c0_i32_1 = arith.constant 0 : i32
    return %c0_i32, %c0_i32_0 : i32, i32
  }
  func.func @transform_6(%arg0: i32) -> (i32, i32) {
    %c0_i32 = arith.constant 0 : i32
    %c0_i32_0 = arith.constant 0 : i32
    %c0_i32_1 = arith.constant 0 : i32
    return %c0_i32, %c0_i32_0 : i32, i32
  }
  func.func @transform_7(%arg0: i32) -> (i32, i32) {
    %c0_i32 = arith.constant 0 : i32
    %c0_i32_0 = arith.constant 0 : i32
    %c0_i32_1 = arith.constant 0 : i32
    return %c0_i32, %c0_i32_0 : i32, i32
  }
  func.func @transform_8(%arg0: i32) -> (i32, i32, i32) {
    %c0_i32 = arith.constant 0 : i32
    %c0_i32_0 = arith.constant 0 : i32
    %c0_i32_1 = arith.constant 0 : i32
    return %arg0, %c0_i32, %c0_i32_0 : i32, i32, i32
  }
}

</mosaic_0001>

<llo_original>
// kernel: resblock_forward.1
$region0: #{resblock_forward.1}
  #allocation0 [shape = 'u32[]', space=smem, size = 0x4, offset = 0x4, fixed_abs, tag = 'smem constant byte address 0x4 - core index']
  #allocation1 [shape = 'u32[72,128]{1,0:T(1,128)}', space=vmem, size = 0x9000, scoped, tag = 'internal scratch']
  #allocation2 [shape = 'f32[8,512]{1,0:T(8,128)}', space=vmem, size = 0x4000, scoped, tag = 'scratch operand']
  #allocation3 [shape = 'f32[8,512]{1,0:T(8,128)}', space=vmem, size = 0x4000, scoped, tag = 'scratch operand']
  %s0 = inlined_call_operand.vmem [shape: f32[2,8,256], index: 0, kind: input, shape index: {}]
  %s1 = inlined_call_operand.vmem [shape: f32[9,256], index: 1, kind: input, shape index: {}]
  %s2 = inlined_call_operand.vmem [shape: f32[9,8,8], index: 2, kind: input, shape index: {}]
  %s3 = inlined_call_operand.vmem [shape: f32[8,1], index: 3, kind: input, shape index: {}]
  %s4 = inlined_call_operand.vmem [shape: f32[9,8,8], index: 4, kind: input, shape index: {}]
  %s5 = inlined_call_operand.vmem [shape: f32[8,1], index: 5, kind: input, shape index: {}]
  %s6 = inlined_call_operand.vmem [shape: f32[8,8], index: 6, kind: input, shape index: {}]
  %s7 = inlined_call_operand.vmem [shape: f32[8,1], index: 7, kind: input, shape index: {}]
  %s8 = inlined_call_operand.vmem [shape: f32[2,8,256], index: 8, kind: output, shape index: {}]
  %s9 = sld [smem:[#allocation0]]
  $region65: #{resblock_forward.1} parent=0
    _
  %s11 = ssub.s32 1, %s9
  %s12 = scalar_select 0, %s11, %s9
  loop: start=0, step=1, limit=4
  $region2: #{resblock_forward.1} parent=0 // loop_pre_header
    _
  $region3: #{resblock_forward.1} parent=0 // loop_header
    %s14 = sphi 0, %s18
    %p15 = scmp.ge.s32.totalorder %s14, 4
    %s24 = sphi 0, %s26
    %s27 = sphi 0, %s24
    %s28 = sphi 0, %s27
    %s44 = sphi 0, %s28
    %s48 = sphi 0, %s48
    %s50 = sphi 0, %s48
    %s51 = sphi 0, %s50
    %s65 = sphi 0, %s51
    %s69 = sphi 0, %s69
    %s71 = sphi 0, %s69
    %s72 = sphi 0, %s71
    %s86 = sphi 0, %s72
    %s90 = sphi 0, %s90
    %s92 = sphi 0, %s90
    %s93 = sphi 0, %s92
    %s107 = sphi 0, %s93
    %s111 = sphi 0, %s111
    %s113 = sphi 0, %s111
    %s114 = sphi 0, %s113
    %s128 = sphi 0, %s114
    %s132 = sphi 0, %s132
    %s134 = sphi 0, %s132
    %s135 = sphi 0, %s134
    %s149 = sphi 0, %s135
    %s153 = sphi 0, %s153
    %s155 = sphi 0, %s153
    %s156 = sphi 0, %s155
    %s170 = sphi 0, %s156
    %s174 = sphi 0, %s174
    %s176 = sphi 0, %s174
    %s177 = sphi 0, %s176
    %s191 = sphi 0, %s177
    %s197 = sphi 0, %s199
    %s200 = sphi 0, %s197
    %s201 = sphi 0, %s200
    %s217 = sphi 0, %s201
  $region4: #{resblock_forward.1} parent=0 // loop_header_branch
    %17 = sbr.rel (%p15) target = $region8
  $region5: #{resblock_forward.1} parent=0 // loop_body
    %s19 = ssub.s32 %s14, 1
    %s20 = ssub.s32 %s14, 2
    %s21 = sadd.s32 %s14, 1
    %s22 = ssub.s32 %s14, %s21
    %p23 = scmp.eq.s32.totalorder %s22, 0
    %s25 = sadd.s32 %s24, 1
    %s26 = scalar_select %p23, %s24, %s25
    %p29 = pneg %p23
    %p30 = scmp.eq.s32.totalorder %s14, 1
    %p31 = por %p29, %p30
    %p32 = scmp.ne.s32.totalorder %s24, %s27
    %p33 = scmp.eq.s32.totalorder %s14, 0
    %p34 = por %p32, %p33
    %p35 = scmp.ne.s32.totalorder %s24, %s27
    %p36 = scmp.eq.s32.totalorder %s19, 1
    %p37 = por %p35, %p36
    %p38 = scmp.ne.s32.totalorder %s27, %s28
    %p39 = scmp.eq.s32.totalorder %s19, 0
    %p40 = por %p38, %p39
    %p41 = scmp.ne.s32.totalorder %s27, %s28
    %p42 = scmp.eq.s32.totalorder %s20, 1
    %p43 = por %p41, %p42
    %p45 = scmp.ne.s32.totalorder %s28, %s44
    %p46 = scmp.eq.s32.totalorder %s20, 0
    %p47 = por %p45, %p46
    %s49 = sadd.s32 %s48, 1
    %p52 = scmp.eq.s32.totalorder %s14, 1
    %p53 = scmp.ne.s32.totalorder %s48, %s50
    %p54 = scmp.eq.s32.totalorder %s14, 0
    %p55 = por %p53, %p54
    %p56 = scmp.ne.s32.totalorder %s48, %s50
    %p57 = scmp.eq.s32.totalorder %s19, 1
    %p58 = por %p56, %p57
    %p59 = scmp.ne.s32.totalorder %s50, %s51
    %p60 = scmp.eq.s32.totalorder %s19, 0
    %p61 = por %p59, %p60
    %p62 = scmp.ne.s32.totalorder %s50, %s51
    %p63 = scmp.eq.s32.totalorder %s20, 1
    %p64 = por %p62, %p63
    %p66 = scmp.ne.s32.totalorder %s51, %s65
    %p67 = scmp.eq.s32.totalorder %s20, 0
    %p68 = por %p66, %p67
    %s70 = sadd.s32 %s69, 1
    %p73 = scmp.eq.s32.totalorder %s14, 1
    %p74 = scmp.ne.s32.totalorder %s69, %s71
    %p75 = scmp.eq.s32.totalorder %s14, 0
    %p76 = por %p74, %p75
    %p77 = scmp.ne.s32.totalorder %s69, %s71
    %p78 = scmp.eq.s32.totalorder %s19, 1
    %p79 = por %p77, %p78
    %p80 = scmp.ne.s32.totalorder %s71, %s72
    %p81 = scmp.eq.s32.totalorder %s19, 0
    %p82 = por %p80, %p81
    %p83 = scmp.ne.s32.totalorder %s71, %s72
    %p84 = scmp.eq.s32.totalorder %s20, 1
    %p85 = por %p83, %p84
    %p87 = scmp.ne.s32.totalorder %s72, %s86
    %p88 = scmp.eq.s32.totalorder %s20, 0
    %p89 = por %p87, %p88
    %s91 = sadd.s32 %s90, 1
    %p94 = scmp.eq.s32.totalorder %s14, 1
    %p95 = scmp.ne.s32.totalorder %s90, %s92
    %p96 = scmp.eq.s32.totalorder %s14, 0
    %p97 = por %p95, %p96
    %p98 = scmp.ne.s32.totalorder %s90, %s92
    %p99 = scmp.eq.s32.totalorder %s19, 1
    %p100 = por %p98, %p99
    %p101 = scmp.ne.s32.totalorder %s92, %s93
    %p102 = scmp.eq.s32.totalorder %s19, 0
    %p103 = por %p101, %p102
    %p104 = scmp.ne.s32.totalorder %s92, %s93
    %p105 = scmp.eq.s32.totalorder %s20, 1
    %p106 = por %p104, %p105
    %p108 = scmp.ne.s32.totalorder %s93, %s107
    %p109 = scmp.eq.s32.totalorder %s20, 0
    %p110 = por %p108, %p109
    %s112 = sadd.s32 %s111, 1
    %p115 = scmp.eq.s32.totalorder %s14, 1
    %p116 = scmp.ne.s32.totalorder %s111, %s113
    %p117 = scmp.eq.s32.totalorder %s14, 0
    %p118 = por %p116, %p117
    %p119 = scmp.ne.s32.totalorder %s111, %s113
    %p120 = scmp.eq.s32.totalorder %s19, 1
    %p121 = por %p119, %p120
    %p122 = scmp.ne.s32.totalorder %s113, %s114
    %p123 = scmp.eq.s32.totalorder %s19, 0
    %p124 = por %p122, %p123
    %p125 = scmp.ne.s32.totalorder %s113, %s114
    %p126 = scmp.eq.s32.totalorder %s20, 1
    %p127 = por %p125, %p126
    %p129 = scmp.ne.s32.totalorder %s114, %s128
    %p130 = scmp.eq.s32.totalorder %s20, 0
    %p131 = por %p129, %p130
    %s133 = sadd.s32 %s132, 1
    %p136 = scmp.eq.s32.totalorder %s14, 1
    %p137 = scmp.ne.s32.totalorder %s132, %s134
    %p138 = scmp.eq.s32.totalorder %s14, 0
    %p139 = por %p137, %p138
    %p140 = scmp.ne.s32.totalorder %s132, %s134
    %p141 = scmp.eq.s32.totalorder %s19, 1
    %p142 = por %p140, %p141
    %p143 = scmp.ne.s32.totalorder %s134, %s135
    %p144 = scmp.eq.s32.totalorder %s19, 0
    %p145 = por %p143, %p144
    %p146 = scmp.ne.s32.totalorder %s134, %s135
    %p147 = scmp.eq.s32.totalorder %s20, 1
    %p148 = por %p146, %p147
    %p150 = scmp.ne.s32.totalorder %s135, %s149
    %p151 = scmp.eq.s32.totalorder %s20, 0
    %p152 = por %p150, %p151
    %s154 = sadd.s32 %s153, 1
    %p157 = scmp.eq.s32.totalorder %s14, 1
    %p158 = scmp.ne.s32.totalorder %s153, %s155
    %p159 = scmp.eq.s32.totalorder %s14, 0
    %p160 = por %p158, %p159
    %p161 = scmp.ne.s32.totalorder %s153, %s155
    %p162 = scmp.eq.s32.totalorder %s19, 1
    %p163 = por %p161, %p162
    %p164 = scmp.ne.s32.totalorder %s155, %s156
    %p165 = scmp.eq.s32.totalorder %s19, 0
    %p166 = por %p164, %p165
    %p167 = scmp.ne.s32.totalorder %s155, %s156
    %p168 = scmp.eq.s32.totalorder %s20, 1
    %p169 = por %p167, %p168
    %p171 = scmp.ne.s32.totalorder %s156, %s170
    %p172 = scmp.eq.s32.totalorder %s20, 0
    %p173 = por %p171, %p172
    %s175 = sadd.s32 %s174, 1
    %p178 = scmp.eq.s32.totalorder %s14, 1
    %p179 = scmp.ne.s32.totalorder %s174, %s176
    %p180 = scmp.eq.s32.totalorder %s14, 0
    %p181 = por %p179, %p180
    %p182 = scmp.ne.s32.totalorder %s174, %s176
    %p183 = scmp.eq.s32.totalorder %s19, 1
    %p184 = por %p182, %p183
    %p185 = scmp.ne.s32.totalorder %s176, %s177
    %p186 = scmp.eq.s32.totalorder %s19, 0
    %p187 = por %p185, %p186
    %p188 = scmp.ne.s32.totalorder %s176, %s177
    %p189 = scmp.eq.s32.totalorder %s20, 1
    %p190 = por %p188, %p189
    %p192 = scmp.ne.s32.totalorder %s177, %s191
    %p193 = scmp.eq.s32.totalorder %s20, 0
    %p194 = por %p192, %p193
    %s195 = ssub.s32 %s14, %s21
    %p196 = scmp.eq.s32.totalorder %s195, 0
    %s198 = sadd.s32 %s197, 1
    %s199 = scalar_select %p196, %s197, %s198
    %p202 = pneg %p196
    %p203 = scmp.eq.s32.totalorder %s14, 1
    %p204 = por %p202, %p203
    %p205 = scmp.ne.s32.totalorder %s197, %s200
    %p206 = scmp.eq.s32.totalorder %s14, 0
    %p207 = por %p205, %p206
    %p208 = scmp.ne.s32.totalorder %s197, %s200
    %p209 = scmp.eq.s32.totalorder %s19, 1
    %p210 = por %p208, %p209
    %p211 = scmp.ne.s32.totalorder %s200, %s201
    %p212 = scmp.eq.s32.totalorder %s19, 0
    %p213 = por %p211, %p212
    %p214 = scmp.ne.s32.totalorder %s200, %s201
    %p215 = scmp.eq.s32.totalorder %s20, 1
    %p216 = por %p214, %p215
    %p218 = scmp.ne.s32.totalorder %s201, %s217
    %p219 = scmp.eq.s32.totalorder %s20, 0
    %p220 = por %p218, %p219
    %p221 = scmp.le.s32.totalorder 1, %s14
    %p222 = scmp.lt.s32.totalorder %s14, 3
    %p223 = pnand %p221, %p222
    %p224 = pneg %p223
    // Predicated region
    $region9: #{resblock_forward.1} parent=5 // pred_check
      _
    $region10: #{resblock_forward.1} parent=5 // pred_check_branch
      %226 = sbr.rel (%p223) target = $region12
    $region11: #{resblock_forward.1} parent=5 // pred_region
      %s227 = ssub.s32 %s14, 1
      // Predicated region
      $region13: #{resblock_forward.1} parent=11 // pred_check
        %p228 = pneg %p61
      $region14: #{resblock_forward.1} parent=11 // pred_check_branch
        %230 = sbr.rel (%p228) target = $region16
      $region15: #{resblock_forward.1} parent=11 // pred_region
        _
      $region16: #{resblock_forward.1} parent=11 // pred_fallthru
        _
      // Predicated region
      $region17: #{resblock_forward.1} parent=11 // pred_check
        %p231 = pneg %p82
      $region18: #{resblock_forward.1} parent=11 // pred_check_branch
        %233 = sbr.rel (%p231) target = $region20
      $region19: #{resblock_forward.1} parent=11 // pred_region
        _
      $region20: #{resblock_forward.1} parent=11 // pred_fallthru
        _
      // Predicated region
      $region21: #{resblock_forward.1} parent=11 // pred_check
        %p234 = pneg %p103
      $region22: #{resblock_forward.1} parent=11 // pred_check_branch
        %236 = sbr.rel (%p234) target = $region24
      $region23: #{resblock_forward.1} parent=11 // pred_region
        _
      $region24: #{resblock_forward.1} parent=11 // pred_fallthru
        _
      // Predicated region
      $region25: #{resblock_forward.1} parent=11 // pred_check
        %p237 = pneg %p124
      $region26: #{resblock_forward.1} parent=11 // pred_check_branch
        %239 = sbr.rel (%p237) target = $region28
      $region27: #{resblock_forward.1} parent=11 // pred_region
        _
      $region28: #{resblock_forward.1} parent=11 // pred_fallthru
        _
      // Predicated region
      $region29: #{resblock_forward.1} parent=11 // pred_check
        %p240 = pneg %p145
      $region30: #{resblock_forward.1} parent=11 // pred_check_branch
        %242 = sbr.rel (%p240) target = $region32
      $region31: #{resblock_forward.1} parent=11 // pred_region
        _
      $region32: #{resblock_forward.1} parent=11 // pred_fallthru
        _
      // Predicated region
      $region33: #{resblock_forward.1} parent=11 // pred_check
        %p243 = pneg %p166
      $region34: #{resblock_forward.1} parent=11 // pred_check_branch
        %245 = sbr.rel (%p243) target = $region36
      $region35: #{resblock_forward.1} parent=11 // pred_region
        _
      $region36: #{resblock_forward.1} parent=11 // pred_fallthru
        _
      // Predicated region
      $region37: #{resblock_forward.1} parent=11 // pred_check
        %p246 = pneg %p187
      $region38: #{resblock_forward.1} parent=11 // pred_check_branch
        %248 = sbr.rel (%p246) target = $region40
      $region39: #{resblock_forward.1} parent=11 // pred_region
        _
      $region40: #{resblock_forward.1} parent=11 // pred_fallthru
        _
    $region12: #{resblock_forward.1} parent=5 // pred_fallthru
      _
    %p249 = scmp.lt.s32.totalorder %s14, 2
    // Predicated region
    $region41: #{resblock_forward.1} parent=5 // pred_check
      %p250 = pneg %p249
    $region42: #{resblock_forward.1} parent=5 // pred_check_branch
      %252 = sbr.rel (%p250) target = $region44
    $region43: #{resblock_forward.1} parent=5 // pred_region
      // Predicated region
      $region45: #{resblock_forward.1} parent=43 // pred_check
        %p253 = pneg %p34
      $region46: #{resblock_forward.1} parent=43 // pred_check_branch
        %255 = sbr.rel (%p253) target = $region48
      $region47: #{resblock_forward.1} parent=43 // pred_region
        %p256 = scmp.lt.s32.totalorder %s14, 1
        %s257 = scalar_select %p256, %s14, 1
        %s258 = smul.addr %s257, 2
        %s259 = smul.addr %s258, 8
        %s260 = scalar_lea.vmem %s0, %s259
      $region48: #{resblock_forward.1} parent=43 // pred_fallthru
        _
    $region44: #{resblock_forward.1} parent=5 // pred_fallthru
      _
    %p261 = scmp.le.s32.totalorder 1, %s14
    %p262 = scmp.lt.s32.totalorder %s14, 3
    %p263 = pnand %p261, %p262
    %p264 = pneg %p263
    // Predicated region
    $region49: #{resblock_forward.1} parent=5 // pred_check
      _
    $region50: #{resblock_forward.1} parent=5 // pred_check_branch
      %266 = sbr.rel (%p263) target = $region52
    $region51: #{resblock_forward.1} parent=5 // pred_region
      %s267 = ssub.s32 %s14, 1
      %p268 = scmp.lt.s32.totalorder %s19, 1
      %s269 = scalar_select %p268, %s19, 1
      %s270 = smul.addr %s269, 2
      %s271 = smul.addr %s270, 8
      %s272 = scalar_lea.vmem %s0, %s271
      %p273 = pneg %p40
      %p274 = pneg %p37
      %p275 = pneg %p61
      %p276 = pneg %p58
      %p277 = pneg %p82
      %p278 = pneg %p79
      %p279 = pneg %p103
      %p280 = pneg %p100
      %p281 = pneg %p124
      %p282 = pneg %p121
      %p283 = pneg %p145
      %p284 = pneg %p142
      %p285 = pneg %p166
      %p286 = pneg %p163
      %p287 = pneg %p187
      %p288 = pneg %p184
      %p289 = pneg %p213
      %p290 = pneg %p210
      %p291 = scmp.lt.s32.totalorder %s19, 1
      %s292 = scalar_select %p291, %s19, 1
      %s293 = smul.addr %s292, 2
      %s294 = smul.addr %s293, 8
      %s295 = scalar_lea.vmem %s8, %s294
      %p296 = scmp.lt.s32.totalorder %s19, 1
      %s297 = scalar_select %p296, %s19, 1
      %s298 = smul.addr %s297, 2
      %s299 = smul.addr %s298, 8
      %s300 = scalar_lea.vmem %s0, %s299
      %p301 = scmp.lt.s32.totalorder %s19, 1
      %s302 = scalar_select %p301, %s19, 1
      %s303 = smul.addr %s302, 2
      %s304 = smul.addr %s303, 8
      %s305 = scalar_lea.vmem %s8, %s304
      %v306 = vld [vmem:[%s300] sm:$0xff]
      %v307 = vld [vmem:[%s300 + $0x8] sm:$0xff]
      %308 = vst [vmem:[#allocation2 + $0x8] sm:$0xff] %v306
      %309 = vst [vmem:[#allocation2 + $0x10] sm:$0xff] %v307
      %v310 = vld [vmem:[#allocation2] sm:$0xff]
      %v311 = vld [vmem:[#allocation2 + $0x8] sm:$0xff]
      %v312 = vld [vmem:[#allocation2 + $0x10] sm:$0xff]
      %v313 = vld [vmem:[%s1] ss:$8 sm:$0x3]
      %vm314 = vcmp.gt.f32.partialorder %v313, 0.0
      %v315 = vsel %vm314, 1, 0
      %v316 = vperm.slane %v315, 0
      %v317 = vperm.slane %v315, 1
      %vm318 = vcmp.eq.s32.totalorder %v316, 1
      %vm319 = vcmp.eq.s32.totalorder %v317, 1
      %323 = vrot.lane.b32.xlu0 %v310, 17
      %v324 = vpop.permute.xlu0 %323
      %325 = vrot.lane.b32.xlu0 %v311, 17
      %v326 = vpop.permute.xlu0 %325
      %327 = vrot.lane.b32.xlu0 %v312, 17
      %v328 = vpop.permute.xlu0 %327
      %vm329 = vcmask 138240
      %v330 = vsel %vm329, %v324, %v326
      %v331 = vsel %vm329, %v326, %v328
      %v334 = vsel %vm318, %v330, 0.0
      %v335 = vsel %vm319, %v331, 0.0
      %v336 = vld [vmem:[%s2] sm:$0xff]
      %s337 = scalar_lea.vmem %s1, 1
      %v338 = vld [vmem:[%s337] ss:$8 sm:$0x3]
      %vm339 = vcmp.gt.f32.partialorder %v338, 0.0
      %v340 = vsel %vm339, 1, 0
      %v341 = vperm.slane %v340, 0
      %v342 = vperm.slane %v340, 1
      %vm343 = vcmp.eq.s32.totalorder %v341, 1
      %vm344 = vcmp.eq.s32.totalorder %v342, 1
      %345 = vrot.lane.b32.xlu0 %v310, 16
      %v346 = vpop.permute.xlu0 %345
      %347 = vrot.lane.b32.xlu0 %v311, 16
      %v348 = vpop.permute.xlu0 %347
      %349 = vrot.lane.b32.xlu0 %v312, 16
      %v350 = vpop.permute.xlu0 %349
      %vm351 = vcmask 130048
      %v352 = vsel %vm351, %v346, %v348
      %v353 = vsel %vm351, %v348, %v350
      %v356 = vsel %vm343, %v352, 0.0
      %v357 = vsel %vm344, %v353, 0.0
      %s358 = scalar_lea.vmem %s2, 8
      %v359 = vld [vmem:[%s358] sm:$0xff]
      %vm360 = vcmask 64512
      %v362 = vsel %vm360, %v359, 0
      %364 = vmatpush.msra.mxu0 0.0
      %365 = vmatpush.msra.mxu0 0.0
      %366 = vmatpush.msra.mxu0 0.0
      %367 = vmatpush.msra.mxu0 0.0
      %368 = vmatpush.msra.mxu0 0.0
      %369 = vmatpush.msra.mxu0 0.0
      %370 = vmatpush.msra.mxu0 0.0
      %371 = vmatpush.msra.mxu0 0.0
      %372 = vmatpush.msra.mxu0 0.0
      %373 = vmatpush.msra.mxu0 0.0
      %374 = vmatpush.msra.mxu0 0.0
      %375 = vmatpush.msra.mxu0 0.0
      %376 = vmatpush.msra.mxu0 0.0
      %377 = vmatpush.msra.mxu0 0.0
      %378 = vmatpush.msra.mxu0 0.0
      %379 = vmatpush.msra.mxu0 %v356
      %380 = vmatmul.f32.gmra.mxu0 %v362
      %v381 = vpop.f32.mrf.mxu0
      %v382 = vadd.f32 0.0, %v381
      %383 = vdwg.mxu0
      %384 = vmatpush.msra.mxu0 0.0
      %385 = vmatpush.msra.mxu0 0.0
      %386 = vmatpush.msra.mxu0 0.0
      %387 = vmatpush.msra.mxu0 0.0
      %388 = vmatpush.msra.mxu0 0.0
      %389 = vmatpush.msra.mxu0 0.0
      %390 = vmatpush.msra.mxu0 0.0
      %391 = vmatpush.msra.mxu0 0.0
      %392 = vmatpush.msra.mxu0 0.0
      %393 = vmatpush.msra.mxu0 0.0
      %394 = vmatpush.msra.mxu0 0.0
      %395 = vmatpush.msra.mxu0 0.0
      %396 = vmatpush.msra.mxu0 0.0
      %397 = vmatpush.msra.mxu0 0.0
      %398 = vmatpush.msra.mxu0 0.0
      %399 = vmatpush.msra.mxu0 %v357
      %400 = vmatmul.f32.gmra.mxu0 %v362
      %v401 = vpop.f32.mrf.mxu0
      %v402 = vadd.f32 0.0, %v401
      %403 = vdwg.mxu0
      %s404 = scalar_lea.vmem %s1, 2
      %v405 = vld [vmem:[%s404] ss:$8 sm:$0x3]
      %vm406 = vcmp.gt.f32.partialorder %v405, 0.0
      %v407 = vsel %vm406, 1, 0
      %v408 = vperm.slane %v407, 0
      %v409 = vperm.slane %v407, 1
      %vm410 = vcmp.eq.s32.totalorder %v408, 1
      %vm411 = vcmp.eq.s32.totalorder %v409, 1
      %412 = vrot.lane.b32.xlu0 %v310, 15
      %v413 = vpop.permute.xlu0 %412
      %414 = vrot.lane.b32.xlu0 %v311, 15
      %v415 = vpop.permute.xlu0 %414
      %416 = vrot.lane.b32.xlu0 %v312, 15
      %v417 = vpop.permute.xlu0 %416
      %vm418 = vcmask 121856
      %v419 = vsel %vm418, %v413, %v415
      %v420 = vsel %vm418, %v415, %v417
      %v423 = vsel %vm410, %v419, 0.0
      %v424 = vsel %vm411, %v420, 0.0
      %s425 = scalar_lea.vmem %s2, 16
      %v426 = vld [vmem:[%s425] sm:$0xff]
      %s427 = scalar_lea.vmem %s1, 3
      %v428 = vld [vmem:[%s427] ss:$8 sm:$0x3]
      %vm429 = vcmp.gt.f32.partialorder %v428, 0.0
      %v430 = vsel %vm429, 1, 0
      %v431 = vperm.slane %v430, 0
      %v432 = vperm.slane %v430, 1
      %vm433 = vcmp.eq.s32.totalorder %v431, 1
      %vm434 = vcmp.eq.s32.totalorder %v432, 1
      %435 = vrot.lane.b32.xlu0 %v310, 1
      %v436 = vpop.permute.xlu0 %435
      %437 = vrot.lane.b32.xlu0 %v311, 1
      %v438 = vpop.permute.xlu0 %437
      %439 = vrot.lane.b32.xlu0 %v312, 1
      %v440 = vpop.permute.xlu0 %439
      %vm441 = vcmask 7168
      %v442 = vsel %vm441, %v436, %v438
      %v443 = vsel %vm441, %v438, %v440
      %v446 = vsel %vm433, %v442, 0.0
      %v447 = vsel %vm434, %v443, 0.0
      %s448 = scalar_lea.vmem %s2, 24
      %v449 = vld [vmem:[%s448] sm:$0xff]
      %v451 = vsel %vm360, %v449, 0
      %453 = vmatpush.msra.mxu0 0.0
      %454 = vmatpush.msra.mxu0 0.0
      %455 = vmatpush.msra.mxu0 0.0
      %456 = vmatpush.msra.mxu0 0.0
      %457 = vmatpush.msra.mxu0 0.0
      %458 = vmatpush.msra.mxu0 0.0
      %459 = vmatpush.msra.mxu0 0.0
      %460 = vmatpush.msra.mxu0 0.0
      %461 = vmatpush.msra.mxu0 0.0
      %462 = vmatpush.msra.mxu0 0.0
      %463 = vmatpush.msra.mxu0 0.0
      %464 = vmatpush.msra.mxu0 0.0
      %465 = vmatpush.msra.mxu0 0.0
      %466 = vmatpush.msra.mxu0 0.0
      %467 = vmatpush.msra.mxu0 0.0
      %468 = vmatpush.msra.mxu0 %v446
      %469 = vmatmul.f32.gmra.mxu0 %v451
      %v470 = vpop.f32.mrf.mxu0
      %v471 = vadd.f32 0.0, %v470
      %472 = vdwg.mxu0
      %473 = vmatpush.msra.mxu0 0.0
      %474 = vmatpush.msra.mxu0 0.0
      %475 = vmatpush.msra.mxu0 0.0
      %476 = vmatpush.msra.mxu0 0.0
      %477 = vmatpush.msra.mxu0 0.0
      %478 = vmatpush.msra.mxu0 0.0
      %479 = vmatpush.msra.mxu0 0.0
      %480 = vmatpush.msra.mxu0 0.0
      %481 = vmatpush.msra.mxu0 0.0
      %482 = vmatpush.msra.mxu0 0.0
      %483 = vmatpush.msra.mxu0 0.0
      %484 = vmatpush.msra.mxu0 0.0
      %485 = vmatpush.msra.mxu0 0.0
      %486 = vmatpush.msra.mxu0 0.0
      %487 = vmatpush.msra.mxu0 0.0
      %488 = vmatpush.msra.mxu0 %v447
      %489 = vmatmul.f32.gmra.mxu0 %v451
      %v490 = vpop.f32.mrf.mxu0
      %v491 = vadd.f32 0.0, %v490
      %492 = vdwg.mxu0
      %s493 = scalar_lea.vmem %s1, 4
      %v494 = vld [vmem:[%s493] ss:$8 sm:$0x3]
      %vm495 = vcmp.gt.f32.partialorder %v494, 0.0
      %v496 = vsel %vm495, 1, 0
      %v497 = vperm.slane %v496, 0
      %v498 = vperm.slane %v496, 1
      %vm499 = vcmp.eq.s32.totalorder %v497, 1
      %vm500 = vcmp.eq.s32.totalorder %v498, 1
      %v501 = vsel %vm499, %v311, 0.0
      %v502 = vsel %vm500, %v312, 0.0
      %s503 = scalar_lea.vmem %s2, 32
      %v504 = vld [vmem:[%s503] sm:$0xff]
      %v505 = vld [vmem:[#allocation2 + $0x8] sm:$0xff]
      %v506 = vld [vmem:[#allocation2 + $0x10] sm:$0xff]
      %v507 = vld [vmem:[#allocation2 + $0x18] sm:$0xff]
      %s508 = scalar_lea.vmem %s1, 5
      %v509 = vld [vmem:[%s508] ss:$8 sm:$0x3]
      %vm510 = vcmp.gt.f32.partialorder %v509, 0.0
      %v511 = vsel %vm510, 1, 0
      %v512 = vperm.slane %v511, 0
      %v513 = vperm.slane %v511, 1
      %vm514 = vcmp.eq.s32.totalorder %v512, 1
      %vm515 = vcmp.eq.s32.totalorder %v513, 1
      %519 = vrot.lane.b32.xlu0 %v505, 127
      %v520 = vpop.permute.xlu0 %519
      %521 = vrot.lane.b32.xlu0 %v506, 127
      %v522 = vpop.permute.xlu0 %521
      %523 = vrot.lane.b32.xlu0 %v507, 127
      %v524 = vpop.permute.xlu0 %523
      %vm525 = vcmask 1039360
      %v526 = vsel %vm525, %v520, %v522
      %v527 = vsel %vm525, %v522, %v524
      %v530 = vsel %vm514, %v526, 0.0
      %v531 = vsel %vm515, %v527, 0.0
      %s532 = scalar_lea.vmem %s2, 40
      %v533 = vld [vmem:[%s532] sm:$0xff]
      %v535 = vsel %vm360, %v533, 0
      %537 = vmatpush.msra.mxu0 0.0
      %538 = vmatpush.msra.mxu0 0.0
      %539 = vmatpush.msra.mxu0 0.0
      %540 = vmatpush.msra.mxu0 0.0
      %541 = vmatpush.msra.mxu0 0.0
      %542 = vmatpush.msra.mxu0 0.0
      %543 = vmatpush.msra.mxu0 0.0
      %544 = vmatpush.msra.mxu0 0.0
      %545 = vmatpush.msra.mxu0 0.0
      %546 = vmatpush.msra.mxu0 0.0
      %547 = vmatpush.msra.mxu0 0.0
      %548 = vmatpush.msra.mxu0 0.0
      %549 = vmatpush.msra.mxu0 0.0
      %550 = vmatpush.msra.mxu0 0.0
      %551 = vmatpush.msra.mxu0 0.0
      %552 = vmatpush.msra.mxu0 %v530
      %553 = vmatmul.f32.gmra.mxu0 %v535
      %v554 = vpop.f32.mrf.mxu0
      %v555 = vadd.f32 0.0, %v554
      %556 = vdwg.mxu0
      %557 = vmatpush.msra.mxu0 0.0
      %558 = vmatpush.msra.mxu0 0.0
      %559 = vmatpush.msra.mxu0 0.0
      %560 = vmatpush.msra.mxu0 0.0
      %561 = vmatpush.msra.mxu0 0.0
      %562 = vmatpush.msra.mxu0 0.0
      %563 = vmatpush.msra.mxu0 0.0
      %564 = vmatpush.msra.mxu0 0.0
      %565 = vmatpush.msra.mxu0 0.0
      %566 = vmatpush.msra.mxu0 0.0
      %567 = vmatpush.msra.mxu0 0.0
      %568 = vmatpush.msra.mxu0 0.0
      %569 = vmatpush.msra.mxu0 0.0
      %570 = vmatpush.msra.mxu0 0.0
      %571 = vmatpush.msra.mxu0 0.0
      %572 = vmatpush.msra.mxu0 %v531
      %573 = vmatmul.f32.gmra.mxu0 %v535
      %v574 = vpop.f32.mrf.mxu0
      %v575 = vadd.f32 0.0, %v574
      %576 = vdwg.mxu0
      %s577 = scalar_lea.vmem %s1, 6
      %v578 = vld [vmem:[%s577] ss:$8 sm:$0x3]
      %vm579 = vcmp.gt.f32.partialorder %v578, 0.0
      %v580 = vsel %vm579, 1, 0
      %v581 = vperm.slane %v580, 0
      %v582 = vperm.slane %v580, 1
      %vm583 = vcmp.eq.s32.totalorder %v581, 1
      %vm584 = vcmp.eq.s32.totalorder %v582, 1
      %585 = vrot.lane.b32.xlu0 %v505, 113
      %v586 = vpop.permute.xlu0 %585
      %587 = vrot.lane.b32.xlu0 %v506, 113
      %v588 = vpop.permute.xlu0 %587
      %589 = vrot.lane.b32.xlu0 %v507, 113
      %v590 = vpop.permute.xlu0 %589
      %vm591 = vcmask 924672
      %v592 = vsel %vm591, %v586, %v588
      %v593 = vsel %vm591, %v588, %v590
      %v596 = vsel %vm583, %v592, 0.0
      %v597 = vsel %vm584, %v593, 0.0
      %s598 = scalar_lea.vmem %s2, 48
      %v599 = vld [vmem:[%s598] sm:$0xff]
      %s600 = scalar_lea.vmem %s1, 7
      %v601 = vld [vmem:[%s600] ss:$8 sm:$0x3]
      %vm602 = vcmp.gt.f32.partialorder %v601, 0.0
      %v603 = vsel %vm602, 1, 0
      %v604 = vperm.slane %v603, 0
      %v605 = vperm.slane %v603, 1
      %vm606 = vcmp.eq.s32.totalorder %v604, 1
      %vm607 = vcmp.eq.s32.totalorder %v605, 1
      %608 = vrot.lane.b32.xlu0 %v505, 112
      %v609 = vpop.permute.xlu0 %608
      %610 = vrot.lane.b32.xlu0 %v506, 112
      %v611 = vpop.permute.xlu0 %610
      %612 = vrot.lane.b32.xlu0 %v507, 112
      %v613 = vpop.permute.xlu0 %612
      %vm614 = vcmask 916480
      %v615 = vsel %vm614, %v609, %v611
      %v616 = vsel %vm614, %v611, %v613
      %v619 = vsel %vm606, %v615, 0.0
      %v620 = vsel %vm607, %v616, 0.0
      %s621 = scalar_lea.vmem %s2, 56
      %v622 = vld [vmem:[%s621] sm:$0xff]
      %v624 = vsel %vm360, %v622, 0
      %626 = vmatpush.msra.mxu0 0.0
      %627 = vmatpush.msra.mxu0 0.0
      %628 = vmatpush.msra.mxu0 0.0
      %629 = vmatpush.msra.mxu0 0.0
      %630 = vmatpush.msra.mxu0 0.0
      %631 = vmatpush.msra.mxu0 0.0
      %632 = vmatpush.msra.mxu0 0.0
      %633 = vmatpush.msra.mxu0 0.0
      %634 = vmatpush.msra.mxu0 0.0
      %635 = vmatpush.msra.mxu0 0.0
      %636 = vmatpush.msra.mxu0 0.0
      %637 = vmatpush.msra.mxu0 0.0
      %638 = vmatpush.msra.mxu0 0.0
      %639 = vmatpush.msra.mxu0 0.0
      %640 = vmatpush.msra.mxu0 0.0
      %641 = vmatpush.msra.mxu0 %v619
      %642 = vmatmul.f32.gmra.mxu0 %v624
      %v643 = vpop.f32.mrf.mxu0
      %v644 = vadd.f32 0.0, %v643
      %645 = vdwg.mxu0
      %646 = vmatpush.msra.mxu0 0.0
      %647 = vmatpush.msra.mxu0 0.0
      %648 = vmatpush.msra.mxu0 0.0
      %649 = vmatpush.msra.mxu0 0.0
      %650 = vmatpush.msra.mxu0 0.0
      %651 = vmatpush.msra.mxu0 0.0
      %652 = vmatpush.msra.mxu0 0.0
      %653 = vmatpush.msra.mxu0 0.0
      %654 = vmatpush.msra.mxu0 0.0
      %655 = vmatpush.msra.mxu0 0.0
      %656 = vmatpush.msra.mxu0 0.0
      %657 = vmatpush.msra.mxu0 0.0
      %658 = vmatpush.msra.mxu0 0.0
      %659 = vmatpush.msra.mxu0 0.0
      %660 = vmatpush.msra.mxu0 0.0
      %661 = vmatpush.msra.mxu0 %v620
      %662 = vmatmul.f32.gmra.mxu0 %v624
      %v663 = vpop.f32.mrf.mxu0
      %v664 = vadd.f32 0.0, %v663
      %665 = vdwg.mxu0
      %s666 = scalar_lea.vmem %s1, 16
      %v667 = vld [vmem:[%s666] ss:$8 sm:$0x3]
      %vm668 = vcmp.gt.f32.partialorder %v667, 0.0
      %v669 = vsel %vm668, 1, 0
      %v670 = vperm.slane %v669, 0
      %v671 = vperm.slane %v669, 1
      %vm672 = vcmp.eq.s32.totalorder %v670, 1
      %vm673 = vcmp.eq.s32.totalorder %v671, 1
      %674 = vrot.lane.b32.xlu0 %v505, 111
      %v675 = vpop.permute.xlu0 %674
      %676 = vrot.lane.b32.xlu0 %v506, 111
      %v677 = vpop.permute.xlu0 %676
      %678 = vrot.lane.b32.xlu0 %v507, 111
      %v679 = vpop.permute.xlu0 %678
      %vm680 = vcmask 908288
      %v681 = vsel %vm680, %v675, %v677
      %v682 = vsel %vm680, %v677, %v679
      %v685 = vsel %vm672, %v681, 0.0
      %v686 = vsel %vm673, %v682, 0.0
      %s687 = scalar_lea.vmem %s2, 64
      %v688 = vld [vmem:[%s687] sm:$0xff]
      %v690 = vsel %vm360, %v688, 0
      %692 = vmatpush.msra.mxu0 0.0
      %693 = vmatpush.msra.mxu0 0.0
      %694 = vmatpush.msra.mxu0 0.0
      %695 = vmatpush.msra.mxu0 0.0
      %696 = vmatpush.msra.mxu0 0.0
      %697 = vmatpush.msra.mxu0 0.0
      %698 = vmatpush.msra.mxu0 0.0
      %699 = vmatpush.msra.mxu0 0.0
      %700 = vmatpush.msra.mxu0 0.0
      %701 = vmatpush.msra.mxu0 0.0
      %702 = vmatpush.msra.mxu0 0.0
      %703 = vmatpush.msra.mxu0 0.0
      %704 = vmatpush.msra.mxu0 0.0
      %705 = vmatpush.msra.mxu0 0.0
      %706 = vmatpush.msra.mxu0 0.0
      %707 = vmatpush.msra.mxu0 %v685
      %708 = vmatmul.f32.gmra.mxu0 %v690
      %v709 = vpop.f32.mrf.mxu0
      %v710 = vadd.f32 0.0, %v709
      %711 = vdwg.mxu0
      %712 = vmatpush.msra.mxu0 0.0
      %713 = vmatpush.msra.mxu0 0.0
      %714 = vmatpush.msra.mxu0 0.0
      %715 = vmatpush.msra.mxu0 0.0
      %716 = vmatpush.msra.mxu0 0.0
      %717 = vmatpush.msra.mxu0 0.0
      %718 = vmatpush.msra.mxu0 0.0
      %719 = vmatpush.msra.mxu0 0.0
      %720 = vmatpush.msra.mxu0 0.0
      %721 = vmatpush.msra.mxu0 0.0
      %722 = vmatpush.msra.mxu0 0.0
      %723 = vmatpush.msra.mxu0 0.0
      %724 = vmatpush.msra.mxu0 0.0
      %725 = vmatpush.msra.mxu0 0.0
      %726 = vmatpush.msra.mxu0 0.0
      %727 = vmatpush.msra.mxu0 %v686
      %728 = vmatmul.f32.gmra.mxu0 %v690
      %v729 = vpop.f32.mrf.mxu0
      %v730 = vadd.f32 0.0, %v729
      %731 = vdwg.mxu0
      %v733 = vsel %vm360, %v336, 0
      %735 = vmatpush.msra.mxu0 0.0
      %736 = vmatpush.msra.mxu0 0.0
      %737 = vmatpush.msra.mxu0 0.0
      %738 = vmatpush.msra.mxu0 0.0
      %739 = vmatpush.msra.mxu0 0.0
      %740 = vmatpush.msra.mxu0 0.0
      %741 = vmatpush.msra.mxu0 0.0
      %742 = vmatpush.msra.mxu0 0.0
      %743 = vmatpush.msra.mxu0 0.0
      %744 = vmatpush.msra.mxu0 0.0
      %745 = vmatpush.msra.mxu0 0.0
      %746 = vmatpush.msra.mxu0 0.0
      %747 = vmatpush.msra.mxu0 0.0
      %748 = vmatpush.msra.mxu0 0.0
      %749 = vmatpush.msra.mxu0 0.0
      %750 = vmatpush.msra.mxu0 %v334
      %751 = vmatmul.f32.gmra.mxu0 %v733
      %v752 = vpop.f32.mrf.mxu0
      %v753 = vadd.f32 %v382, %v752
      %754 = vdwg.mxu0
      %755 = vmatpush.msra.mxu0 0.0
      %756 = vmatpush.msra.mxu0 0.0
      %757 = vmatpush.msra.mxu0 0.0
      %758 = vmatpush.msra.mxu0 0.0
      %759 = vmatpush.msra.mxu0 0.0
      %760 = vmatpush.msra.mxu0 0.0
      %761 = vmatpush.msra.mxu0 0.0
      %762 = vmatpush.msra.mxu0 0.0
      %763 = vmatpush.msra.mxu0 0.0
      %764 = vmatpush.msra.mxu0 0.0
      %765 = vmatpush.msra.mxu0 0.0
      %766 = vmatpush.msra.mxu0 0.0
      %767 = vmatpush.msra.mxu0 0.0
      %768 = vmatpush.msra.mxu0 0.0
      %769 = vmatpush.msra.mxu0 0.0
      %770 = vmatpush.msra.mxu0 %v335
      %771 = vmatmul.f32.gmra.mxu0 %v733
      %v772 = vpop.f32.mrf.mxu0
      %v773 = vadd.f32 %v402, %v772
      %774 = vdwg.mxu0
      %v776 = vsel %vm360, %v426, 0
      %778 = vmatpush.msra.mxu0 0.0
      %779 = vmatpush.msra.mxu0 0.0
      %780 = vmatpush.msra.mxu0 0.0
      %781 = vmatpush.msra.mxu0 0.0
      %782 = vmatpush.msra.mxu0 0.0
      %783 = vmatpush.msra.mxu0 0.0
      %784 = vmatpush.msra.mxu0 0.0
      %785 = vmatpush.msra.mxu0 0.0
      %786 = vmatpush.msra.mxu0 0.0
      %787 = vmatpush.msra.mxu0 0.0
      %788 = vmatpush.msra.mxu0 0.0
      %789 = vmatpush.msra.mxu0 0.0
      %790 = vmatpush.msra.mxu0 0.0
      %791 = vmatpush.msra.mxu0 0.0
      %792 = vmatpush.msra.mxu0 0.0
      %793 = vmatpush.msra.mxu0 %v423
      %794 = vmatmul.f32.gmra.mxu0 %v776
      %v795 = vpop.f32.mrf.mxu0
      %v796 = vadd.f32 %v471, %v795
      %797 = vdwg.mxu0
      %798 = vmatpush.msra.mxu0 0.0
      %799 = vmatpush.msra.mxu0 0.0
      %800 = vmatpush.msra.mxu0 0.0
      %801 = vmatpush.msra.mxu0 0.0
      %802 = vmatpush.msra.mxu0 0.0
      %803 = vmatpush.msra.mxu0 0.0
      %804 = vmatpush.msra.mxu0 0.0
      %805 = vmatpush.msra.mxu0 0.0
      %806 = vmatpush.msra.mxu0 0.0
      %807 = vmatpush.msra.mxu0 0.0
      %808 = vmatpush.msra.mxu0 0.0
      %809 = vmatpush.msra.mxu0 0.0
      %810 = vmatpush.msra.mxu0 0.0
      %811 = vmatpush.msra.mxu0 0.0
      %812 = vmatpush.msra.mxu0 0.0
      %813 = vmatpush.msra.mxu0 %v424
      %814 = vmatmul.f32.gmra.mxu0 %v776
      %v815 = vpop.f32.mrf.mxu0
      %v816 = vadd.f32 %v491, %v815
      %817 = vdwg.mxu0
      %v819 = vsel %vm360, %v504, 0
      %821 = vmatpush.msra.mxu0 0.0
      %822 = vmatpush.msra.mxu0 0.0
      %823 = vmatpush.msra.mxu0 0.0
      %824 = vmatpush.msra.mxu0 0.0
      %825 = vmatpush.msra.mxu0 0.0
      %826 = vmatpush.msra.mxu0 0.0
      %827 = vmatpush.msra.mxu0 0.0
      %828 = vmatpush.msra.mxu0 0.0
      %829 = vmatpush.msra.mxu0 0.0
      %830 = vmatpush.msra.mxu0 0.0
      %831 = vmatpush.msra.mxu0 0.0
      %832 = vmatpush.msra.mxu0 0.0
      %833 = vmatpush.msra.mxu0 0.0
      %834 = vmatpush.msra.mxu0 0.0
      %835 = vmatpush.msra.mxu0 0.0
      %836 = vmatpush.msra.mxu0 %v501
      %837 = vmatmul.f32.gmra.mxu0 %v819
      %v838 = vpop.f32.mrf.mxu0
      %v839 = vadd.f32 %v555, %v838
      %840 = vdwg.mxu0
      %841 = vmatpush.msra.mxu0 0.0
      %842 = vmatpush.msra.mxu0 0.0
      %843 = vmatpush.msra.mxu0 0.0
      %844 = vmatpush.msra.mxu0 0.0
      %845 = vmatpush.msra.mxu0 0.0
      %846 = vmatpush.msra.mxu0 0.0
      %847 = vmatpush.msra.mxu0 0.0
      %848 = vmatpush.msra.mxu0 0.0
      %849 = vmatpush.msra.mxu0 0.0
      %850 = vmatpush.msra.mxu0 0.0
      %851 = vmatpush.msra.mxu0 0.0
      %852 = vmatpush.msra.mxu0 0.0
      %853 = vmatpush.msra.mxu0 0.0
      %854 = vmatpush.msra.mxu0 0.0
      %855 = vmatpush.msra.mxu0 0.0
      %856 = vmatpush.msra.mxu0 %v502
      %857 = vmatmul.f32.gmra.mxu0 %v819
      %v858 = vpop.f32.mrf.mxu0
      %v859 = vadd.f32 %v575, %v858
      %860 = vdwg.mxu0
      %v862 = vsel %vm360, %v599, 0
      %864 = vmatpush.msra.mxu0 0.0
      %865 = vmatpush.msra.mxu0 0.0
      %866 = vmatpush.msra.mxu0 0.0
      %867 = vmatpush.msra.mxu0 0.0
      %868 = vmatpush.msra.mxu0 0.0
      %869 = vmatpush.msra.mxu0 0.0
      %870 = vmatpush.msra.mxu0 0.0
      %871 = vmatpush.msra.mxu0 0.0
      %872 = vmatpush.msra.mxu0 0.0
      %873 = vmatpush.msra.mxu0 0.0
      %874 = vmatpush.msra.mxu0 0.0
      %875 = vmatpush.msra.mxu0 0.0
      %876 = vmatpush.msra.mxu0 0.0
      %877 = vmatpush.msra.mxu0 0.0
      %878 = vmatpush.msra.mxu0 0.0
      %879 = vmatpush.msra.mxu0 %v596
      %880 = vmatmul.f32.gmra.mxu0 %v862
      %v881 = vpop.f32.mrf.mxu0
      %v882 = vadd.f32 %v644, %v881
      %883 = vdwg.mxu0
      %884 = vmatpush.msra.mxu0 0.0
      %885 = vmatpush.msra.mxu0 0.0
      %886 = vmatpush.msra.mxu0 0.0
      %887 = vmatpush.msra.mxu0 0.0
      %888 = vmatpush.msra.mxu0 0.0
      %889 = vmatpush.msra.mxu0 0.0
      %890 = vmatpush.msra.mxu0 0.0
      %891 = vmatpush.msra.mxu0 0.0
      %892 = vmatpush.msra.mxu0 0.0
      %893 = vmatpush.msra.mxu0 0.0
      %894 = vmatpush.msra.mxu0 0.0
      %895 = vmatpush.msra.mxu0 0.0
      %896 = vmatpush.msra.mxu0 0.0
      %897 = vmatpush.msra.mxu0 0.0
      %898 = vmatpush.msra.mxu0 0.0
      %899 = vmatpush.msra.mxu0 %v597
      %900 = vmatmul.f32.gmra.mxu0 %v862
      %v901 = vpop.f32.mrf.mxu0
      %v902 = vadd.f32 %v664, %v901
      %903 = vdwg.mxu0
      %v904 = vadd.f32 %v753, %v796
      %v905 = vadd.f32 %v773, %v816
      %v906 = vadd.f32 %v839, %v882
      %v907 = vadd.f32 %v859, %v902
      %v908 = vadd.f32 %v904, %v906
      %v909 = vadd.f32 %v905, %v907
      %v910 = vadd.f32 %v908, %v710
      %v911 = vadd.f32 %v909, %v730
      %v912 = vld [vmem:[%s3] sm:$0xff]
      %914 = vset.pattern.permute.xlu0 0
      %915 = vperm.xlu0 %914, %v912
      %v916 = vpop.permute.xlu0 %915
      %v918 = vadd.f32 %v910, %v916
      %v919 = vadd.f32 %v911, %v916
      %v920 = vmax.f32 %v918, 0.0
      %v921 = vmax.f32 %v919, 0.0
      %922 = vst [vmem:[#allocation3 + $0x8] sm:$0xff] %v920
      %923 = vst [vmem:[#allocation3 + $0x10] sm:$0xff] %v921
      %v924 = vld [vmem:[#allocation3] sm:$0xff]
      %v925 = vld [vmem:[#allocation3 + $0x8] sm:$0xff]
      %v926 = vld [vmem:[#allocation3 + $0x10] sm:$0xff]
      %v927 = vld [vmem:[%s1] ss:$8 sm:$0x3]
      %vm928 = vcmp.gt.f32.partialorder %v927, 0.0
      %v929 = vsel %vm928, 1, 0
      %v930 = vperm.slane %v929, 0
      %v931 = vperm.slane %v929, 1
      %vm932 = vcmp.eq.s32.totalorder %v930, 1
      %vm933 = vcmp.eq.s32.totalorder %v931, 1
      %937 = vrot.lane.b32.xlu0 %v924, 17
      %v938 = vpop.permute.xlu0 %937
      %939 = vrot.lane.b32.xlu0 %v925, 17
      %v940 = vpop.permute.xlu0 %939
      %941 = vrot.lane.b32.xlu0 %v926, 17
      %v942 = vpop.permute.xlu0 %941
      %v943 = vsel %vm329, %v938, %v940
      %v944 = vsel %vm329, %v940, %v942
      %v947 = vsel %vm932, %v943, 0.0
      %v948 = vsel %vm933, %v944, 0.0
      %v949 = vld [vmem:[%s4] sm:$0xff]
      %v950 = vld [vmem:[%s337] ss:$8 sm:$0x3]
      %vm951 = vcmp.gt.f32.partialorder %v950, 0.0
      %v952 = vsel %vm951, 1, 0
      %v953 = vperm.slane %v952, 0
      %v954 = vperm.slane %v952, 1
      %vm955 = vcmp.eq.s32.totalorder %v953, 1
      %vm956 = vcmp.eq.s32.totalorder %v954, 1
      %957 = vrot.lane.b32.xlu0 %v924, 16
      %v958 = vpop.permute.xlu0 %957
      %959 = vrot.lane.b32.xlu0 %v925, 16
      %v960 = vpop.permute.xlu0 %959
      %961 = vrot.lane.b32.xlu0 %v926, 16
      %v962 = vpop.permute.xlu0 %961
      %v963 = vsel %vm351, %v958, %v960
      %v964 = vsel %vm351, %v960, %v962
      %v967 = vsel %vm955, %v963, 0.0
      %v968 = vsel %vm956, %v964, 0.0
      %s969 = scalar_lea.vmem %s4, 8
      %v970 = vld [vmem:[%s969] sm:$0xff]
      %v972 = vsel %vm360, %v970, 0
      %974 = vmatpush.msra.mxu0 0.0
      %975 = vmatpush.msra.mxu0 0.0
      %976 = vmatpush.msra.mxu0 0.0
      %977 = vmatpush.msra.mxu0 0.0
      %978 = vmatpush.msra.mxu0 0.0
      %979 = vmatpush.msra.mxu0 0.0
      %980 = vmatpush.msra.mxu0 0.0
      %981 = vmatpush.msra.mxu0 0.0
      %982 = vmatpush.msra.mxu0 0.0
      %983 = vmatpush.msra.mxu0 0.0
      %984 = vmatpush.msra.mxu0 0.0
      %985 = vmatpush.msra.mxu0 0.0
      %986 = vmatpush.msra.mxu0 0.0
      %987 = vmatpush.msra.mxu0 0.0
      %988 = vmatpush.msra.mxu0 0.0
      %989 = vmatpush.msra.mxu0 %v967
      %990 = vmatmul.f32.gmra.mxu0 %v972
      %v991 = vpop.f32.mrf.mxu0
      %v992 = vadd.f32 0.0, %v991
      %993 = vdwg.mxu0
      %994 = vmatpush.msra.mxu0 0.0
      %995 = vmatpush.msra.mxu0 0.0
      %996 = vmatpush.msra.mxu0 0.0
      %997 = vmatpush.msra.mxu0 0.0
      %998 = vmatpush.msra.mxu0 0.0
      %999 = vmatpush.msra.mxu0 0.0
      %1000 = vmatpush.msra.mxu0 0.0
      %1001 = vmatpush.msra.mxu0 0.0
      %1002 = vmatpush.msra.mxu0 0.0
      %1003 = vmatpush.msra.mxu0 0.0
      %1004 = vmatpush.msra.mxu0 0.0
      %1005 = vmatpush.msra.mxu0 0.0
      %1006 = vmatpush.msra.mxu0 0.0
      %1007 = vmatpush.msra.mxu0 0.0
      %1008 = vmatpush.msra.mxu0 0.0
      %1009 = vmatpush.msra.mxu0 %v968
      %1010 = vmatmul.f32.gmra.mxu0 %v972
      %v1011 = vpop.f32.mrf.mxu0
      %v1012 = vadd.f32 0.0, %v1011
      %1013 = vdwg.mxu0
      %v1014 = vld [vmem:[%s404] ss:$8 sm:$0x3]
      %vm1015 = vcmp.gt.f32.partialorder %v1014, 0.0
      %v1016 = vsel %vm1015, 1, 0
      %v1017 = vperm.slane %v1016, 0
      %v1018 = vperm.slane %v1016, 1
      %vm1019 = vcmp.eq.s32.totalorder %v1017, 1
      %vm1020 = vcmp.eq.s32.totalorder %v1018, 1
      %1021 = vrot.lane.b32.xlu0 %v924, 15
      %v1022 = vpop.permute.xlu0 %1021
      %1023 = vrot.lane.b32.xlu0 %v925, 15
      %v1024 = vpop.permute.xlu0 %1023
      %1025 = vrot.lane.b32.xlu0 %v926, 15
      %v1026 = vpop.permute.xlu0 %1025
      %v1027 = vsel %vm418, %v1022, %v1024
      %v1028 = vsel %vm418, %v1024, %v1026
      %v1031 = vsel %vm1019, %v1027, 0.0
      %v1032 = vsel %vm1020, %v1028, 0.0
      %s1033 = scalar_lea.vmem %s4, 16
      %v1034 = vld [vmem:[%s1033] sm:$0xff]
      %v1035 = vld [vmem:[%s427] ss:$8 sm:$0x3]
      %vm1036 = vcmp.gt.f32.partialorder %v1035, 0.0
      %v1037 = vsel %vm1036, 1, 0
      %v1038 = vperm.slane %v1037, 0
      %v1039 = vperm.slane %v1037, 1
      %vm1040 = vcmp.eq.s32.totalorder %v1038, 1
      %vm1041 = vcmp.eq.s32.totalorder %v1039, 1
      %1042 = vrot.lane.b32.xlu0 %v924, 1
      %v1043 = vpop.permute.xlu0 %1042
      %1044 = vrot.lane.b32.xlu0 %v925, 1
      %v1045 = vpop.permute.xlu0 %1044
      %1046 = vrot.lane.b32.xlu0 %v926, 1
      %v1047 = vpop.permute.xlu0 %1046
      %v1048 = vsel %vm441, %v1043, %v1045
      %v1049 = vsel %vm441, %v1045, %v1047
      %v1052 = vsel %vm1040, %v1048, 0.0
      %v1053 = vsel %vm1041, %v1049, 0.0
      %s1054 = scalar_lea.vmem %s4, 24
      %v1055 = vld [vmem:[%s1054] sm:$0xff]
      %v1057 = vsel %vm360, %v1055, 0
      %1059 = vmatpush.msra.mxu0 0.0
      %1060 = vmatpush.msra.mxu0 0.0
      %1061 = vmatpush.msra.mxu0 0.0
      %1062 = vmatpush.msra.mxu0 0.0
      %1063 = vmatpush.msra.mxu0 0.0
      %1064 = vmatpush.msra.mxu0 0.0
      %1065 = vmatpush.msra.mxu0 0.0
      %1066 = vmatpush.msra.mxu0 0.0
      %1067 = vmatpush.msra.mxu0 0.0
      %1068 = vmatpush.msra.mxu0 0.0
      %1069 = vmatpush.msra.mxu0 0.0
      %1070 = vmatpush.msra.mxu0 0.0
      %1071 = vmatpush.msra.mxu0 0.0
      %1072 = vmatpush.msra.mxu0 0.0
      %1073 = vmatpush.msra.mxu0 0.0
      %1074 = vmatpush.msra.mxu0 %v1052
      %1075 = vmatmul.f32.gmra.mxu0 %v1057
      %v1076 = vpop.f32.mrf.mxu0
      %v1077 = vadd.f32 0.0, %v1076
      %1078 = vdwg.mxu0
      %1079 = vmatpush.msra.mxu0 0.0
      %1080 = vmatpush.msra.mxu0 0.0
      %1081 = vmatpush.msra.mxu0 0.0
      %1082 = vmatpush.msra.mxu0 0.0
      %1083 = vmatpush.msra.mxu0 0.0
      %1084 = vmatpush.msra.mxu0 0.0
      %1085 = vmatpush.msra.mxu0 0.0
      %1086 = vmatpush.msra.mxu0 0.0
      %1087 = vmatpush.msra.mxu0 0.0
      %1088 = vmatpush.msra.mxu0 0.0
      %1089 = vmatpush.msra.mxu0 0.0
      %1090 = vmatpush.msra.mxu0 0.0
      %1091 = vmatpush.msra.mxu0 0.0
      %1092 = vmatpush.msra.mxu0 0.0
      %1093 = vmatpush.msra.mxu0 0.0
      %1094 = vmatpush.msra.mxu0 %v1053
      %1095 = vmatmul.f32.gmra.mxu0 %v1057
      %v1096 = vpop.f32.mrf.mxu0
      %v1097 = vadd.f32 0.0, %v1096
      %1098 = vdwg.mxu0
      %v1099 = vld [vmem:[%s493] ss:$8 sm:$0x3]
      %vm1100 = vcmp.gt.f32.partialorder %v1099, 0.0
      %v1101 = vsel %vm1100, 1, 0
      %v1102 = vperm.slane %v1101, 0
      %v1103 = vperm.slane %v1101, 1
      %vm1104 = vcmp.eq.s32.totalorder %v1102, 1
      %vm1105 = vcmp.eq.s32.totalorder %v1103, 1
      %v1106 = vsel %vm1104, %v925, 0.0
      %v1107 = vsel %vm1105, %v926, 0.0
      %s1108 = scalar_lea.vmem %s4, 32
      %v1109 = vld [vmem:[%s1108] sm:$0xff]
      %v1110 = vld [vmem:[#allocation3 + $0x8] sm:$0xff]
      %v1111 = vld [vmem:[#allocation3 + $0x10] sm:$0xff]
      %v1112 = vld [vmem:[#allocation3 + $0x18] sm:$0xff]
      %v1113 = vld [vmem:[%s508] ss:$8 sm:$0x3]
      %vm1114 = vcmp.gt.f32.partialorder %v1113, 0.0
      %v1115 = vsel %vm1114, 1, 0
      %v1116 = vperm.slane %v1115, 0
      %v1117 = vperm.slane %v1115, 1
      %vm1118 = vcmp.eq.s32.totalorder %v1116, 1
      %vm1119 = vcmp.eq.s32.totalorder %v1117, 1
      %1123 = vrot.lane.b32.xlu0 %v1110, 127
      %v1124 = vpop.permute.xlu0 %1123
      %1125 = vrot.lane.b32.xlu0 %v1111, 127
      %v1126 = vpop.permute.xlu0 %1125
      %1127 = vrot.lane.b32.xlu0 %v1112, 127
      %v1128 = vpop.permute.xlu0 %1127
      %v1129 = vsel %vm525, %v1124, %v1126
      %v1130 = vsel %vm525, %v1126, %v1128
      %v1133 = vsel %vm1118, %v1129, 0.0
      %v1134 = vsel %vm1119, %v1130, 0.0
      %s1135 = scalar_lea.vmem %s4, 40
      %v1136 = vld [vmem:[%s1135] sm:$0xff]
      %v1138 = vsel %vm360, %v1136, 0
      %1140 = vmatpush.msra.mxu0 0.0
      %1141 = vmatpush.msra.mxu0 0.0
      %1142 = vmatpush.msra.mxu0 0.0
      %1143 = vmatpush.msra.mxu0 0.0
      %1144 = vmatpush.msra.mxu0 0.0
      %1145 = vmatpush.msra.mxu0 0.0
      %1146 = vmatpush.msra.mxu0 0.0
      %1147 = vmatpush.msra.mxu0 0.0
      %1148 = vmatpush.msra.mxu0 0.0
      %1149 = vmatpush.msra.mxu0 0.0
      %1150 = vmatpush.msra.mxu0 0.0
      %1151 = vmatpush.msra.mxu0 0.0
      %1152 = vmatpush.msra.mxu0 0.0
      %1153 = vmatpush.msra.mxu0 0.0
      %1154 = vmatpush.msra.mxu0 0.0
      %1155 = vmatpush.msra.mxu0 %v1133
      %1156 = vmatmul.f32.gmra.mxu0 %v1138
      %v1157 = vpop.f32.mrf.mxu0
      %v1158 = vadd.f32 0.0, %v1157
      %1159 = vdwg.mxu0
      %1160 = vmatpush.msra.mxu0 0.0
      %1161 = vmatpush.msra.mxu0 0.0
      %1162 = vmatpush.msra.mxu0 0.0
      %1163 = vmatpush.msra.mxu0 0.0
      %1164 = vmatpush.msra.mxu0 0.0
      %1165 = vmatpush.msra.mxu0 0.0
      %1166 = vmatpush.msra.mxu0 0.0
      %1167 = vmatpush.msra.mxu0 0.0
      %1168 = vmatpush.msra.mxu0 0.0
      %1169 = vmatpush.msra.mxu0 0.0
      %1170 = vmatpush.msra.mxu0 0.0
      %1171 = vmatpush.msra.mxu0 0.0
      %1172 = vmatpush.msra.mxu0 0.0
      %1173 = vmatpush.msra.mxu0 0.0
      %1174 = vmatpush.msra.mxu0 0.0
      %1175 = vmatpush.msra.mxu0 %v1134
      %1176 = vmatmul.f32.gmra.mxu0 %v1138
      %v1177 = vpop.f32.mrf.mxu0
      %v1178 = vadd.f32 0.0, %v1177
      %1179 = vdwg.mxu0
      %v1180 = vld [vmem:[%s577] ss:$8 sm:$0x3]
      %vm1181 = vcmp.gt.f32.partialorder %v1180, 0.0
      %v1182 = vsel %vm1181, 1, 0
      %v1183 = vperm.slane %v1182, 0
      %v1184 = vperm.slane %v1182, 1
      %vm1185 = vcmp.eq.s32.totalorder %v1183, 1
      %vm1186 = vcmp.eq.s32.totalorder %v1184, 1
      %1187 = vrot.lane.b32.xlu0 %v1110, 113
      %v1188 = vpop.permute.xlu0 %1187
      %1189 = vrot.lane.b32.xlu0 %v1111, 113
      %v1190 = vpop.permute.xlu0 %1189
      %1191 = vrot.lane.b32.xlu0 %v1112, 113
      %v1192 = vpop.permute.xlu0 %1191
      %v1193 = vsel %vm591, %v1188, %v1190
      %v1194 = vsel %vm591, %v1190, %v1192
      %v1197 = vsel %vm1185, %v1193, 0.0
      %v1198 = vsel %vm1186, %v1194, 0.0
      %s1199 = scalar_lea.vmem %s4, 48
      %v1200 = vld [vmem:[%s1199] sm:$0xff]
      %v1201 = vld [vmem:[%s600] ss:$8 sm:$0x3]
      %vm1202 = vcmp.gt.f32.partialorder %v1201, 0.0
      %v1203 = vsel %vm1202, 1, 0
      %v1204 = vperm.slane %v1203, 0
      %v1205 = vperm.slane %v1203, 1
      %vm1206 = vcmp.eq.s32.totalorder %v1204, 1
      %vm1207 = vcmp.eq.s32.totalorder %v1205, 1
      %1208 = vrot.lane.b32.xlu0 %v1110, 112
      %v1209 = vpop.permute.xlu0 %1208
      %1210 = vrot.lane.b32.xlu0 %v1111, 112
      %v1211 = vpop.permute.xlu0 %1210
      %1212 = vrot.lane.b32.xlu0 %v1112, 112
      %v1213 = vpop.permute.xlu0 %1212
      %v1214 = vsel %vm614, %v1209, %v1211
      %v1215 = vsel %vm614, %v1211, %v1213
      %v1218 = vsel %vm1206, %v1214, 0.0
      %v1219 = vsel %vm1207, %v1215, 0.0
      %s1220 = scalar_lea.vmem %s4, 56
      %v1221 = vld [vmem:[%s1220] sm:$0xff]
      %v1223 = vsel %vm360, %v1221, 0
      %1225 = vmatpush.msra.mxu0 0.0
      %1226 = vmatpush.msra.mxu0 0.0
      %1227 = vmatpush.msra.mxu0 0.0
      %1228 = vmatpush.msra.mxu0 0.0
      %1229 = vmatpush.msra.mxu0 0.0
      %1230 = vmatpush.msra.mxu0 0.0
      %1231 = vmatpush.msra.mxu0 0.0
      %1232 = vmatpush.msra.mxu0 0.0
      %1233 = vmatpush.msra.mxu0 0.0
      %1234 = vmatpush.msra.mxu0 0.0
      %1235 = vmatpush.msra.mxu0 0.0
      %1236 = vmatpush.msra.mxu0 0.0
      %1237 = vmatpush.msra.mxu0 0.0
      %1238 = vmatpush.msra.mxu0 0.0
      %1239 = vmatpush.msra.mxu0 0.0
      %1240 = vmatpush.msra.mxu0 %v1218
      %1241 = vmatmul.f32.gmra.mxu0 %v1223
      %v1242 = vpop.f32.mrf.mxu0
      %v1243 = vadd.f32 0.0, %v1242
      %1244 = vdwg.mxu0
      %1245 = vmatpush.msra.mxu0 0.0
      %1246 = vmatpush.msra.mxu0 0.0
      %1247 = vmatpush.msra.mxu0 0.0
      %1248 = vmatpush.msra.mxu0 0.0
      %1249 = vmatpush.msra.mxu0 0.0
      %1250 = vmatpush.msra.mxu0 0.0
      %1251 = vmatpush.msra.mxu0 0.0
      %1252 = vmatpush.msra.mxu0 0.0
      %1253 = vmatpush.msra.mxu0 0.0
      %1254 = vmatpush.msra.mxu0 0.0
      %1255 = vmatpush.msra.mxu0 0.0
      %1256 = vmatpush.msra.mxu0 0.0
      %1257 = vmatpush.msra.mxu0 0.0
      %1258 = vmatpush.msra.mxu0 0.0
      %1259 = vmatpush.msra.mxu0 0.0
      %1260 = vmatpush.msra.mxu0 %v1219
      %1261 = vmatmul.f32.gmra.mxu0 %v1223
      %v1262 = vpop.f32.mrf.mxu0
      %v1263 = vadd.f32 0.0, %v1262
      %1264 = vdwg.mxu0
      %v1265 = vld [vmem:[%s666] ss:$8 sm:$0x3]
      %vm1266 = vcmp.gt.f32.partialorder %v1265, 0.0
      %v1267 = vsel %vm1266, 1, 0
      %v1268 = vperm.slane %v1267, 0
      %v1269 = vperm.slane %v1267, 1
      %vm1270 = vcmp.eq.s32.totalorder %v1268, 1
      %vm1271 = vcmp.eq.s32.totalorder %v1269, 1
      %1272 = vrot.lane.b32.xlu0 %v1110, 111
      %v1273 = vpop.permute.xlu0 %1272
      %1274 = vrot.lane.b32.xlu0 %v1111, 111
      %v1275 = vpop.permute.xlu0 %1274
      %1276 = vrot.lane.b32.xlu0 %v1112, 111
      %v1277 = vpop.permute.xlu0 %1276
      %v1278 = vsel %vm680, %v1273, %v1275
      %v1279 = vsel %vm680, %v1275, %v1277
      %v1282 = vsel %vm1270, %v1278, 0.0
      %v1283 = vsel %vm1271, %v1279, 0.0
      %s1284 = scalar_lea.vmem %s4, 64
      %v1285 = vld [vmem:[%s1284] sm:$0xff]
      %v1287 = vsel %vm360, %v1285, 0
      %1289 = vmatpush.msra.mxu0 0.0
      %1290 = vmatpush.msra.mxu0 0.0
      %1291 = vmatpush.msra.mxu0 0.0
      %1292 = vmatpush.msra.mxu0 0.0
      %1293 = vmatpush.msra.mxu0 0.0
      %1294 = vmatpush.msra.mxu0 0.0
      %1295 = vmatpush.msra.mxu0 0.0
      %1296 = vmatpush.msra.mxu0 0.0
      %1297 = vmatpush.msra.mxu0 0.0
      %1298 = vmatpush.msra.mxu0 0.0
      %1299 = vmatpush.msra.mxu0 0.0
      %1300 = vmatpush.msra.mxu0 0.0
      %1301 = vmatpush.msra.mxu0 0.0
      %1302 = vmatpush.msra.mxu0 0.0
      %1303 = vmatpush.msra.mxu0 0.0
      %1304 = vmatpush.msra.mxu0 %v1282
      %1305 = vmatmul.f32.gmra.mxu0 %v1287
      %v1306 = vpop.f32.mrf.mxu0
      %v1307 = vadd.f32 0.0, %v1306
      %1308 = vdwg.mxu0
      %1309 = vmatpush.msra.mxu0 0.0
      %1310 = vmatpush.msra.mxu0 0.0
      %1311 = vmatpush.msra.mxu0 0.0
      %1312 = vmatpush.msra.mxu0 0.0
      %1313 = vmatpush.msra.mxu0 0.0
      %1314 = vmatpush.msra.mxu0 0.0
      %1315 = vmatpush.msra.mxu0 0.0
      %1316 = vmatpush.msra.mxu0 0.0
      %1317 = vmatpush.msra.mxu0 0.0
      %1318 = vmatpush.msra.mxu0 0.0
      %1319 = vmatpush.msra.mxu0 0.0
      %1320 = vmatpush.msra.mxu0 0.0
      %1321 = vmatpush.msra.mxu0 0.0
      %1322 = vmatpush.msra.mxu0 0.0
      %1323 = vmatpush.msra.mxu0 0.0
      %1324 = vmatpush.msra.mxu0 %v1283
      %1325 = vmatmul.f32.gmra.mxu0 %v1287
      %v1326 = vpop.f32.mrf.mxu0
      %v1327 = vadd.f32 0.0, %v1326
      %1328 = vdwg.mxu0
      %v1330 = vsel %vm360, %v949, 0
      %1332 = vmatpush.msra.mxu0 0.0
      %1333 = vmatpush.msra.mxu0 0.0
      %1334 = vmatpush.msra.mxu0 0.0
      %1335 = vmatpush.msra.mxu0 0.0
      %1336 = vmatpush.msra.mxu0 0.0
      %1337 = vmatpush.msra.mxu0 0.0
      %1338 = vmatpush.msra.mxu0 0.0
      %1339 = vmatpush.msra.mxu0 0.0
      %1340 = vmatpush.msra.mxu0 0.0
      %1341 = vmatpush.msra.mxu0 0.0
      %1342 = vmatpush.msra.mxu0 0.0
      %1343 = vmatpush.msra.mxu0 0.0
      %1344 = vmatpush.msra.mxu0 0.0
      %1345 = vmatpush.msra.mxu0 0.0
      %1346 = vmatpush.msra.mxu0 0.0
      %1347 = vmatpush.msra.mxu0 %v947
      %1348 = vmatmul.f32.gmra.mxu0 %v1330
      %v1349 = vpop.f32.mrf.mxu0
      %v1350 = vadd.f32 %v992, %v1349
      %1351 = vdwg.mxu0
      %1352 = vmatpush.msra.mxu0 0.0
      %1353 = vmatpush.msra.mxu0 0.0
      %1354 = vmatpush.msra.mxu0 0.0
      %1355 = vmatpush.msra.mxu0 0.0
      %1356 = vmatpush.msra.mxu0 0.0
      %1357 = vmatpush.msra.mxu0 0.0
      %1358 = vmatpush.msra.mxu0 0.0
      %1359 = vmatpush.msra.mxu0 0.0
      %1360 = vmatpush.msra.mxu0 0.0
      %1361 = vmatpush.msra.mxu0 0.0
      %1362 = vmatpush.msra.mxu0 0.0
      %1363 = vmatpush.msra.mxu0 0.0
      %1364 = vmatpush.msra.mxu0 0.0
      %1365 = vmatpush.msra.mxu0 0.0
      %1366 = vmatpush.msra.mxu0 0.0
      %1367 = vmatpush.msra.mxu0 %v948
      %1368 = vmatmul.f32.gmra.mxu0 %v1330
      %v1369 = vpop.f32.mrf.mxu0
      %v1370 = vadd.f32 %v1012, %v1369
      %1371 = vdwg.mxu0
      %v1373 = vsel %vm360, %v1034, 0
      %1375 = vmatpush.msra.mxu0 0.0
      %1376 = vmatpush.msra.mxu0 0.0
      %1377 = vmatpush.msra.mxu0 0.0
      %1378 = vmatpush.msra.mxu0 0.0
      %1379 = vmatpush.msra.mxu0 0.0
      %1380 = vmatpush.msra.mxu0 0.0
      %1381 = vmatpush.msra.mxu0 0.0
      %1382 = vmatpush.msra.mxu0 0.0
      %1383 = vmatpush.msra.mxu0 0.0
      %1384 = vmatpush.msra.mxu0 0.0
      %1385 = vmatpush.msra.mxu0 0.0
      %1386 = vmatpush.msra.mxu0 0.0
      %1387 = vmatpush.msra.mxu0 0.0
      %1388 = vmatpush.msra.mxu0 0.0
      %1389 = vmatpush.msra.mxu0 0.0
      %1390 = vmatpush.msra.mxu0 %v1031
      %1391 = vmatmul.f32.gmra.mxu0 %v1373
      %v1392 = vpop.f32.mrf.mxu0
      %v1393 = vadd.f32 %v1077, %v1392
      %1394 = vdwg.mxu0
      %1395 = vmatpush.msra.mxu0 0.0
      %1396 = vmatpush.msra.mxu0 0.0
      %1397 = vmatpush.msra.mxu0 0.0
      %1398 = vmatpush.msra.mxu0 0.0
      %1399 = vmatpush.msra.mxu0 0.0
      %1400 = vmatpush.msra.mxu0 0.0
      %1401 = vmatpush.msra.mxu0 0.0
      %1402 = vmatpush.msra.mxu0 0.0
      %1403 = vmatpush.msra.mxu0 0.0
      %1404 = vmatpush.msra.mxu0 0.0
      %1405 = vmatpush.msra.mxu0 0.0
      %1406 = vmatpush.msra.mxu0 0.0
      %1407 = vmatpush.msra.mxu0 0.0
      %1408 = vmatpush.msra.mxu0 0.0
      %1409 = vmatpush.msra.mxu0 0.0
      %1410 = vmatpush.msra.mxu0 %v1032
      %1411 = vmatmul.f32.gmra.mxu0 %v1373
      %v1412 = vpop.f32.mrf.mxu0
      %v1413 = vadd.f32 %v1097, %v1412
      %1414 = vdwg.mxu0
      %v1416 = vsel %vm360, %v1109, 0
      %1418 = vmatpush.msra.mxu0 0.0
      %1419 = vmatpush.msra.mxu0 0.0
      %1420 = vmatpush.msra.mxu0 0.0
      %1421 = vmatpush.msra.mxu0 0.0
      %1422 = vmatpush.msra.mxu0 0.0
      %1423 = vmatpush.msra.mxu0 0.0
      %1424 = vmatpush.msra.mxu0 0.0
      %1425 = vmatpush.msra.mxu0 0.0
      %1426 = vmatpush.msra.mxu0 0.0
      %1427 = vmatpush.msra.mxu0 0.0
      %1428 = vmatpush.msra.mxu0 0.0
      %1429 = vmatpush.msra.mxu0 0.0
      %1430 = vmatpush.msra.mxu0 0.0
      %1431 = vmatpush.msra.mxu0 0.0
      %1432 = vmatpush.msra.mxu0 0.0
      %1433 = vmatpush.msra.mxu0 %v1106
      %1434 = vmatmul.f32.gmra.mxu0 %v1416
      %v1435 = vpop.f32.mrf.mxu0
      %v1436 = vadd.f32 %v1158, %v1435
      %1437 = vdwg.mxu0
      %1438 = vmatpush.msra.mxu0 0.0
      %1439 = vmatpush.msra.mxu0 0.0
      %1440 = vmatpush.msra.mxu0 0.0
      %1441 = vmatpush.msra.mxu0 0.0
      %1442 = vmatpush.msra.mxu0 0.0
      %1443 = vmatpush.msra.mxu0 0.0
      %1444 = vmatpush.msra.mxu0 0.0
      %1445 = vmatpush.msra.mxu0 0.0
      %1446 = vmatpush.msra.mxu0 0.0
      %1447 = vmatpush.msra.mxu0 0.0
      %1448 = vmatpush.msra.mxu0 0.0
      %1449 = vmatpush.msra.mxu0 0.0
      %1450 = vmatpush.msra.mxu0 0.0
      %1451 = vmatpush.msra.mxu0 0.0
      %1452 = vmatpush.msra.mxu0 0.0
      %1453 = vmatpush.msra.mxu0 %v1107
      %1454 = vmatmul.f32.gmra.mxu0 %v1416
      %v1455 = vpop.f32.mrf.mxu0
      %v1456 = vadd.f32 %v1178, %v1455
      %1457 = vdwg.mxu0
      %v1459 = vsel %vm360, %v1200, 0
      %1461 = vmatpush.msra.mxu0 0.0
      %1462 = vmatpush.msra.mxu0 0.0
      %1463 = vmatpush.msra.mxu0 0.0
      %1464 = vmatpush.msra.mxu0 0.0
      %1465 = vmatpush.msra.mxu0 0.0
      %1466 = vmatpush.msra.mxu0 0.0
      %1467 = vmatpush.msra.mxu0 0.0
      %1468 = vmatpush.msra.mxu0 0.0
      %1469 = vmatpush.msra.mxu0 0.0
      %1470 = vmatpush.msra.mxu0 0.0
      %1471 = vmatpush.msra.mxu0 0.0
      %1472 = vmatpush.msra.mxu0 0.0
      %1473 = vmatpush.msra.mxu0 0.0
      %1474 = vmatpush.msra.mxu0 0.0
      %1475 = vmatpush.msra.mxu0 0.0
      %1476 = vmatpush.msra.mxu0 %v1197
      %1477 = vmatmul.f32.gmra.mxu0 %v1459
      %v1478 = vpop.f32.mrf.mxu0
      %v1479 = vadd.f32 %v1243, %v1478
      %1480 = vdwg.mxu0
      %1481 = vmatpush.msra.mxu0 0.0
      %1482 = vmatpush.msra.mxu0 0.0
      %1483 = vmatpush.msra.mxu0 0.0
      %1484 = vmatpush.msra.mxu0 0.0
      %1485 = vmatpush.msra.mxu0 0.0
      %1486 = vmatpush.msra.mxu0 0.0
      %1487 = vmatpush.msra.mxu0 0.0
      %1488 = vmatpush.msra.mxu0 0.0
      %1489 = vmatpush.msra.mxu0 0.0
      %1490 = vmatpush.msra.mxu0 0.0
      %1491 = vmatpush.msra.mxu0 0.0
      %1492 = vmatpush.msra.mxu0 0.0
      %1493 = vmatpush.msra.mxu0 0.0
      %1494 = vmatpush.msra.mxu0 0.0
      %1495 = vmatpush.msra.mxu0 0.0
      %1496 = vmatpush.msra.mxu0 %v1198
      %1497 = vmatmul.f32.gmra.mxu0 %v1459
      %v1498 = vpop.f32.mrf.mxu0
      %v1499 = vadd.f32 %v1263, %v1498
      %1500 = vdwg.mxu0
      %v1501 = vadd.f32 %v1350, %v1393
      %v1502 = vadd.f32 %v1370, %v1413
      %v1503 = vadd.f32 %v1436, %v1479
      %v1504 = vadd.f32 %v1456, %v1499
      %v1505 = vadd.f32 %v1501, %v1503
      %v1506 = vadd.f32 %v1502, %v1504
      %v1507 = vadd.f32 %v1505, %v1307
      %v1508 = vadd.f32 %v1506, %v1327
      %v1509 = vld [vmem:[%s5] sm:$0xff]
      %1511 = vset.pattern.permute.xlu0 0
      %1512 = vperm.xlu0 %1511, %v1509
      %v1513 = vpop.permute.xlu0 %1512
      %v1515 = vadd.f32 %v1507, %v1513
      %v1516 = vadd.f32 %v1508, %v1513
      %v1517 = vld [vmem:[%s6] sm:$0xff]
      %v1518 = vld [vmem:[%s7] sm:$0xff]
      %1520 = vset.pattern.permute.xlu0 0
      %1521 = vperm.xlu0 %1520, %v1518
      %v1522 = vpop.permute.xlu0 %1521
      %v1525 = vsel %vm360, %v1517, 0
      %1527 = vmatpush.msra.mxu0 0.0
      %1528 = vmatpush.msra.mxu0 0.0
      %1529 = vmatpush.msra.mxu0 0.0
      %1530 = vmatpush.msra.mxu0 0.0
      %1531 = vmatpush.msra.mxu0 0.0
      %1532 = vmatpush.msra.mxu0 0.0
      %1533 = vmatpush.msra.mxu0 0.0
      %1534 = vmatpush.msra.mxu0 0.0
      %1535 = vmatpush.msra.mxu0 0.0
      %1536 = vmatpush.msra.mxu0 0.0
      %1537 = vmatpush.msra.mxu0 0.0
      %1538 = vmatpush.msra.mxu0 0.0
      %1539 = vmatpush.msra.mxu0 0.0
      %1540 = vmatpush.msra.mxu0 0.0
      %1541 = vmatpush.msra.mxu0 0.0
      %1542 = vmatpush.msra.mxu0 %v306
      %1543 = vmatmul.f32.gmra.mxu0 %v1525
      %v1544 = vpop.f32.mrf.mxu0
      %v1545 = vadd.f32 %v1522, %v1544
      %1546 = vdwg.mxu0
      %1547 = vmatpush.msra.mxu0 0.0
      %1548 = vmatpush.msra.mxu0 0.0
      %1549 = vmatpush.msra.mxu0 0.0
      %1550 = vmatpush.msra.mxu0 0.0
      %1551 = vmatpush.msra.mxu0 0.0
      %1552 = vmatpush.msra.mxu0 0.0
      %1553 = vmatpush.msra.mxu0 0.0
      %1554 = vmatpush.msra.mxu0 0.0
      %1555 = vmatpush.msra.mxu0 0.0
      %1556 = vmatpush.msra.mxu0 0.0
      %1557 = vmatpush.msra.mxu0 0.0
      %1558 = vmatpush.msra.mxu0 0.0
      %1559 = vmatpush.msra.mxu0 0.0
      %1560 = vmatpush.msra.mxu0 0.0
      %1561 = vmatpush.msra.mxu0 0.0
      %1562 = vmatpush.msra.mxu0 %v307
      %1563 = vmatmul.f32.gmra.mxu0 %v1525
      %v1564 = vpop.f32.mrf.mxu0
      %v1565 = vadd.f32 %v1522, %v1564
      %1566 = vdwg.mxu0
      %v1567 = vmax.f32 %v1545, 0.0
      %v1568 = vmax.f32 %v1565, 0.0
      %v1569 = vadd.f32 %v1515, %v1567
      %v1570 = vadd.f32 %v1516, %v1568
      %v1571 = vmul.f32 %v1569, 0.70710677
      %v1572 = vmul.f32 %v1570, 0.70710677
      %vm1573 = vcmp.ge.f32.partialorder %v1571, 0.0
      %vm1574 = vcmp.ge.f32.partialorder %v1572, 0.0
      %v1575 = vmul.f32 %v1571, 0.2
      %v1576 = vmul.f32 %v1572, 0.2
      %v1577 = vsel %vm1573, %v1571, %v1575
      %v1578 = vsel %vm1574, %v1572, %v1576
      %1579 = vst [vmem:[%s305] sm:$0xff] %v1577
      %1580 = vst [vmem:[%s305 + $0x8] sm:$0xff] %v1578
      %p1581 = scmp.lt.s32.totalorder %s19, 1
      %s1582 = scalar_select %p1581, %s19, 1
      %s1583 = smul.addr %s1582, 2
      %s1584 = smul.addr %s1583, 8
      %s1585 = scalar_lea.vmem %s8, %s1584
      // Predicated region
      $region53: #{resblock_forward.1} parent=51 // pred_check
        %p1586 = pneg %p210
      $region54: #{resblock_forward.1} parent=51 // pred_check_branch
        %1588 = sbr.rel (%p1586) target = $region56
      $region55: #{resblock_forward.1} parent=51 // pred_region
        _
      $region56: #{resblock_forward.1} parent=51 // pred_fallthru
        _
    $region52: #{resblock_forward.1} parent=5 // pred_fallthru
      _
    %p1589 = scmp.le.s32.totalorder 2, %s14
    // Predicated region
    $region57: #{resblock_forward.1} parent=5 // pred_check
      %p1590 = pneg %p1589
    $region58: #{resblock_forward.1} parent=5 // pred_check_branch
      %1592 = sbr.rel (%p1590) target = $region60
    $region59: #{resblock_forward.1} parent=5 // pred_region
      %s1593 = ssub.s32 %s14, 2
      // Predicated region
      $region61: #{resblock_forward.1} parent=59 // pred_check
        %p1594 = pneg %p216
      $region62: #{resblock_forward.1} parent=59 // pred_check_branch
        %1596 = sbr.rel (%p1594) target = $region64
      $region63: #{resblock_forward.1} parent=59 // pred_region
        %p1597 = scmp.lt.s32.totalorder %s20, 1
        %s1598 = scalar_select %p1597, %s20, 1
        %s1599 = smul.addr %s1598, 2
        %s1600 = smul.addr %s1599, 8
        %s1601 = scalar_lea.vmem %s8, %s1600
      $region64: #{resblock_forward.1} parent=59 // pred_fallthru
        _
    $region60: #{resblock_forward.1} parent=5 // pred_fallthru
      _
  $region6: #{resblock_forward.1} parent=0 // loop_footer
    %s18 = sadd.s32 1, %s14
  $region7: #{resblock_forward.1} parent=0 // loop_footer_branch
    %13 = sbr.rel target = $region3
  $region8: #{resblock_forward.1} parent=0 // loop_exit
    _

</llo_original>
